<compile_context>
chip_gen: v6e
topology: v6e:2x2x1
jax: 0.10.0
libtpu: 0.0.40
codegen_flags: <defaults>
</compile_context>

<pallas_src>
import functools

import jax
import jax.numpy as jnp
from jax.experimental import pallas as pl
from jax.experimental.pallas import tpu as pltpu


def _erf_poly(z):
    """Abramowitz & Stegun 7.1.26 erf approximation, |abs err| <= 1.5e-7."""
    a1, a2, a3, a4, a5 = (0.254829592, -0.284496736, 1.421413741,
                          -1.453152027, 1.061405429)
    p = 0.3275911
    az = jnp.abs(z)
    t = 1.0 / (1.0 + p * az)
    poly = ((((a5 * t + a4) * t + a3) * t + a2) * t + a1) * t
    y = 1.0 - poly * jnp.exp(-az * az)
    return jnp.where(z >= 0.0, y, -y)


def _gelu_erf(z):
    # nn.GELU default ("none" approximation): 0.5 * x * (1 + erf(x / sqrt(2)))
    return 0.5 * z * (1.0 + _erf_poly(z * 0.7071067811865476))


def _block_kernel(x_ref, mask_ref,
                  vecs_ref,                 # (6, D): ln1_w ln1_b ln2_w ln2_b proj_b fc2_b
                  wqkv_ref,                 # (D, 3D), scale folded into Q columns
                  proj_w_ref,               # (D, D)
                  fc1_w_ref, fc1_b_ref,     # (D, hidden), (1, hidden)
                  fc2_w_ref,                # (hidden, D)
                  out_ref, *, num_heads, head_dim, eps):
    f32 = jnp.float32
    D = num_heads * head_dim

    x = x_ref[0].astype(f32)                       # (N, D)
    key_mask = mask_ref[0].astype(f32)             # (1, N)
    # masked_fill(mask == 0, -inf) == add a {0, -inf} bias (logits are finite).
    neg_bias = jnp.where(key_mask == 0.0, -jnp.inf, 0.0)   # (1, N)

    ln1_w = vecs_ref[0:1, :].astype(f32)
    ln1_b = vecs_ref[1:2, :].astype(f32)
    ln2_w = vecs_ref[2:3, :].astype(f32)
    ln2_b = vecs_ref[3:4, :].astype(f32)
    proj_b = vecs_ref[4:5, :].astype(f32)
    fc2_b = vecs_ref[5:6, :].astype(f32)

    def layer_norm(z, w, b):
        mu = jnp.mean(z, axis=-1, keepdims=True)
        c = z - mu
        var = jnp.mean(c * c, axis=-1, keepdims=True)
        return c * jax.lax.rsqrt(var + eps) * w + b

    # ---- Attention branch ---------------------------------------------------
    xn = layer_norm(x, ln1_w, ln1_b)
    # Fused QKV: one (N, D) x (D, 3D) MXU matmul (Q columns pre-scaled).
    qkv = jnp.dot(xn, wqkv_ref[...].astype(f32), preferred_element_type=f32)

    attn_out = jnp.zeros_like(x)                   # (N, D) f32
    for h in range(num_heads):                     # static unroll over heads
        lo = h * head_dim
        hi = lo + head_dim
        qh = qkv[:, lo:hi]
        kh = qkv[:, D + lo:D + hi]
        vh = qkv[:, 2 * D + lo:2 * D + hi]
        # (N, N) logits: contract head_dim of q with head_dim of k (k^T).
        s = jax.lax.dot_general(qh, kh, (((1,), (1,)), ((), ())),
                                preferred_element_type=f32)
        s = s + neg_bias
        s = s - jnp.max(s, axis=-1, keepdims=True)
        e = jnp.exp(s)                              # unnormalized probs
        inv_l = 1.0 / jnp.sum(e, axis=-1, keepdims=True)
        # Defer the softmax division to after P @ V: divide (N, hd) not (N, N).
        oh = jnp.dot(e, vh, preferred_element_type=f32) * inv_l   # (N, hd)
        # Fold output projection into the head loop:
        #   proj(concat_h oh) == sum_h oh @ W_proj[lo:hi, :]
        attn_out = attn_out + jnp.dot(oh, proj_w_ref[lo:hi, :].astype(f32),
                                      preferred_element_type=f32)
    attn_out = attn_out + proj_b

    x1 = x + attn_out                              # first residual

    # ---- MLP branch ---------------------------------------------------------
    x2 = layer_norm(x1, ln2_w, ln2_b)
    hmid = (jnp.dot(x2, fc1_w_ref[...].astype(f32), preferred_element_type=f32)
            + fc1_b_ref[...].astype(f32))
    hmid = _gelu_erf(hmid)
    mlp_out = (jnp.dot(hmid, fc2_w_ref[...].astype(f32),
                       preferred_element_type=f32)
               + fc2_b)

    out_ref[0] = (x1 + mlp_out).astype(out_ref.dtype)


def block_forward(x, mask, params, *, num_heads, eps=1e-5):
    """Pallas implementation of Block.forward([x, mask]) -> [x_out, mask]."""
    B, N, D = x.shape
    head_dim = D // num_heads
    hidden = params["fc1_w"].shape[0]
    scale = float(head_dim) ** -0.5

    # One-time tiny parameter reshuffles (these blocks stay VMEM-resident).
    qkv_w = params["qkv_w"]                        # (3D, D) PyTorch (out, in)
    wq = qkv_w[0:D, :].T * scale                   # fold 1/sqrt(hd) into Wq
    wk = qkv_w[D:2 * D, :].T
    wv = qkv_w[2 * D:3 * D, :].T
    wqkv = jnp.concatenate([wq, wk, wv], axis=1)   # (D, 3D)
    proj_w = params["proj_w"].T                    # (D, D)
    fc1_w = params["fc1_w"].T                      # (D, hidden)
    fc2_w = params["fc2_w"].T                      # (hidden, D)

    # Stack all D-length vectors into a single resident (6, D) operand.
    vecs = jnp.stack([params["ln1_w"], params["ln1_b"],
                      params["ln2_w"], params["ln2_b"],
                      params["proj_b"], params["fc2_b"]], axis=0)

    fc1_b = params["fc1_b"].reshape(1, hidden)
    mask3 = mask.reshape(B, 1, N).astype(jnp.float32)

    kernel = functools.partial(_block_kernel, num_heads=num_heads,
                               head_dim=head_dim, eps=eps)

    def resident(shape):
        return pl.BlockSpec(shape, lambda b: (0, 0))

    out = pl.pallas_call(
        kernel,
        out_shape=jax.ShapeDtypeStruct((B, N, D), x.dtype),
        grid_spec=pltpu.PrefetchScalarGridSpec(
            num_scalar_prefetch=0,
            grid=(B,),
            in_specs=[
                pl.BlockSpec((1, N, D), lambda b: (b, 0, 0)),          # x
                pl.BlockSpec((1, 1, N), lambda b: (b, 0, 0)),          # key mask
                resident((6, D)),                                      # stacked vecs
                resident((D, 3 * D)),                                  # fused Wqkv
                resident((D, D)),                                      # proj w
                resident((D, hidden)), resident((1, hidden)),          # fc1 w, b
                resident((hidden, D)),                                 # fc2 w
            ],
            out_specs=pl.BlockSpec((1, N, D), lambda b: (b, 0, 0)),
        ),
        compiler_params=pltpu.CompilerParams(
            dimension_semantics=("parallel",)),
    )(x, mask3, vecs, wqkv, proj_w, fc1_w, fc1_b, fc2_w)

    return [out, mask]


def block_reference(x, mask, params, *, num_heads, eps=1e-5):
    """Pure-JAX replica of the PyTorch Block forward (no dropout, no layerscale)."""
    B, N, D = x.shape
    hd = D // num_heads
    scale = hd ** -0.5

    def layer_norm(z, w, b):
        mu = z.mean(-1, keepdims=True)
        var = ((z - mu) ** 2).mean(-1, keepdims=True)
        return (z - mu) / jnp.sqrt(var + eps) * w + b

    xn = layer_norm(x, params["ln1_w"], params["ln1_b"])
    qkv = xn @ params["qkv_w"].T                           # (B, N, 3D)
    qkv = qkv.reshape(B, N, 3, num_heads, hd).transpose(2, 0, 3, 1, 4)
    q, k, v = qkv[0], qkv[1], qkv[2]                       # (B, H, N, hd)
    q = q * scale
    attn = q @ jnp.swapaxes(k, -1, -2)                     # (B, H, N, N)
    attn = jnp.where(mask[:, None, None, :] == 0, -jnp.inf, attn)
    attn = jax.nn.softmax(attn, axis=-1)
    o = (attn @ v).transpose(0, 2, 1, 3).reshape(B, N, D)
    o = o @ params["proj_w"].T + params["proj_b"]
    x1 = x + o

    x2 = layer_norm(x1, params["ln2_w"], params["ln2_b"])
    h = x2 @ params["fc1_w"].T + params["fc1_b"]
    h = jax.nn.gelu(h, approximate=False)                  # nn.GELU (erf)
    h = h @ params["fc2_w"].T + params["fc2_b"]
    return x1 + h


if __name__ == "__main__":
    # Small shapes consistent with the module: B=2, seq N=8, dim=32,
    # num_heads=4 (head_dim=8), mlp_ratio=4 -> hidden=128.
    B, N, D = 2, 8, 32
    H = 4
    HIDDEN = int(D * 4.0)

    key = jax.random.PRNGKey(0)
    ks = jax.random.split(key, 13)

    x = jax.random.normal(ks[0], (B, N, D), dtype=jnp.float32)
    # Token mask: 1 = keep, 0 = cut. Guarantee >=1 valid token per batch row
    # (a fully-masked row is NaN in the reference module as well).
    mask = (jax.random.uniform(ks[1], (B, N)) > 0.3).astype(jnp.float32)
    mask = mask.at[:, 0].set(1.0)

    params = dict(
        ln1_w=1.0 + 0.1 * jax.random.normal(ks[2], (D,), jnp.float32),
        ln1_b=0.1 * jax.random.normal(ks[3], (D,), jnp.float32),
        qkv_w=0.05 * jax.random.normal(ks[4], (3 * D, D), jnp.float32),  # qkv_bias=False
        proj_w=0.05 * jax.random.normal(ks[5], (D, D), jnp.float32),
        proj_b=0.05 * jax.random.normal(ks[6], (D,), jnp.float32),
        ln2_w=1.0 + 0.1 * jax.random.normal(ks[7], (D,), jnp.float32),
        ln2_b=0.1 * jax.random.normal(ks[8], (D,), jnp.float32),
        fc1_w=0.05 * jax.random.normal(ks[9], (HIDDEN, D), jnp.float32),
        fc1_b=0.05 * jax.random.normal(ks[10], (HIDDEN,), jnp.float32),
        fc2_w=0.05 * jax.random.normal(ks[11], (D, HIDDEN), jnp.float32),
        fc2_b=0.05 * jax.random.normal(ks[12], (D,), jnp.float32),
    )

    out, out_mask = block_forward(x, mask, params, num_heads=H)
    out = jax.block_until_ready(out)
    assert out.shape == (B, N, D)

    ref = block_reference(x, mask, params, num_heads=H)
    max_err = float(jnp.max(jnp.abs(out - ref)))
    assert jnp.allclose(out, ref, atol=1e-4, rtol=1e-4), f"max_err={max_err}"
    assert jnp.array_equal(out_mask, mask)

    print("KERNEL_OK")
</pallas_src>

<mosaic_0001>
module attributes {stable_mosaic.version = 11 : i64} {
  func.func @_block_kernel(%arg0: i32, %arg1: memref<1x8x32xf32, #tpu.memory_space<vmem>>, %arg2: memref<1x1x8xf32, #tpu.memory_space<vmem>>, %arg3: memref<6x32xf32, #tpu.memory_space<vmem>>, %arg4: memref<32x96xf32, #tpu.memory_space<vmem>>, %arg5: memref<32x32xf32, #tpu.memory_space<vmem>>, %arg6: memref<32x128xf32, #tpu.memory_space<vmem>>, %arg7: memref<1x128xf32, #tpu.memory_space<vmem>>, %arg8: memref<128x32xf32, #tpu.memory_space<vmem>>, %arg9: memref<1x8x32xf32, #tpu.memory_space<vmem>>) attributes {dimension_semantics = [#tpu.dimension_semantics<parallel>], iteration_bounds = array<i64: 2>, scalar_prefetch = 0 : i64, scratch_operands = 0 : i64, tpu.core_type = #tpu.core_type<tc>, window_params = [{transform_indices = @transform_0, window_bounds = array<i64: 1, 8, 32>}, {transform_indices = @transform_1, window_bounds = array<i64: 1, 1, 8>}, {pipeline_mode = #tpu.pipeline_mode<synchronous>, transform_indices = @transform_2, window_bounds = array<i64: 6, 32>}, {pipeline_mode = #tpu.pipeline_mode<synchronous>, transform_indices = @transform_3, window_bounds = array<i64: 32, 96>}, {pipeline_mode = #tpu.pipeline_mode<synchronous>, transform_indices = @transform_4, window_bounds = array<i64: 32, 32>}, {pipeline_mode = #tpu.pipeline_mode<synchronous>, transform_indices = @transform_5, window_bounds = array<i64: 32, 128>}, {pipeline_mode = #tpu.pipeline_mode<synchronous>, transform_indices = @transform_6, window_bounds = array<i64: 1, 128>}, {pipeline_mode = #tpu.pipeline_mode<synchronous>, transform_indices = @transform_7, window_bounds = array<i64: 128, 32>}, {transform_indices = @transform_8, window_bounds = array<i64: 1, 8, 32>}]} {
    %c0 = arith.constant 0 : index
    %c0_0 = arith.constant 0 : index
    %c0_1 = arith.constant 0 : index
    %0 = vector.load %arg1[%c0, %c0_0, %c0_1] : memref<1x8x32xf32, #tpu.memory_space<vmem>>, vector<1x8x32xf32>
    %1 = vector.shape_cast %0 : vector<1x8x32xf32> to vector<8x32xf32>
    %c0_2 = arith.constant 0 : index
    %c0_3 = arith.constant 0 : index
    %c0_4 = arith.constant 0 : index
    %2 = vector.load %arg2[%c0_2, %c0_3, %c0_4] : memref<1x1x8xf32, #tpu.memory_space<vmem>>, vector<1x1x8xf32>
    %3 = vector.shape_cast %2 : vector<1x1x8xf32> to vector<1x8xf32>
    %cst = arith.constant 0.000000e+00 : f32
    %4 = vector.broadcast %cst : f32 to vector<1x8xf32>
    %5 = arith.cmpf oeq, %3, %4 : vector<1x8xf32>
    %cst_5 = arith.constant 0xFF800000 : f32
    %cst_6 = arith.constant 0.000000e+00 : f32
    %6 = vector.broadcast %cst_5 : f32 to vector<1x8xf32>
    %7 = vector.broadcast %cst_6 : f32 to vector<1x8xf32>
    %8 = arith.select %5, %6, %7 : vector<1x8xi1>, vector<1x8xf32>
    %c0_7 = arith.constant 0 : index
    %c0_8 = arith.constant 0 : index
    %9 = vector.load %arg3[%c0_7, %c0_8] : memref<6x32xf32, #tpu.memory_space<vmem>>, vector<1x32xf32>
    %c1 = arith.constant 1 : index
    %c0_9 = arith.constant 0 : index
    %10 = vector.load %arg3[%c1, %c0_9] : memref<6x32xf32, #tpu.memory_space<vmem>>, vector<1x32xf32>
    %c2 = arith.constant 2 : index
    %c0_10 = arith.constant 0 : index
    %11 = vector.load %arg3[%c2, %c0_10] : memref<6x32xf32, #tpu.memory_space<vmem>>, vector<1x32xf32>
    %c3 = arith.constant 3 : index
    %c0_11 = arith.constant 0 : index
    %12 = vector.load %arg3[%c3, %c0_11] : memref<6x32xf32, #tpu.memory_space<vmem>>, vector<1x32xf32>
    %c4 = arith.constant 4 : index
    %c0_12 = arith.constant 0 : index
    %13 = vector.load %arg3[%c4, %c0_12] : memref<6x32xf32, #tpu.memory_space<vmem>>, vector<1x32xf32>
    %c5 = arith.constant 5 : index
    %c0_13 = arith.constant 0 : index
    %14 = vector.load %arg3[%c5, %c0_13] : memref<6x32xf32, #tpu.memory_space<vmem>>, vector<1x32xf32>
    %cst_14 = arith.constant dense<0.000000e+00> : vector<8xf32>
    %15 = vector.multi_reduction <add>, %1, %cst_14 [1] : vector<8x32xf32> to vector<8xf32>
    %16 = vector.shape_cast %15 : vector<8xf32> to vector<8x1xf32>
    %cst_15 = arith.constant 3.200000e+01 : f32
    %17 = vector.broadcast %cst_15 : f32 to vector<8x1xf32>
    %18 = arith.divf %16, %17 : vector<8x1xf32>
    %19 = vector.broadcast %18 : vector<8x1xf32> to vector<8x32xf32>
    %20 = arith.subf %1, %19 : vector<8x32xf32>
    %21 = arith.mulf %20, %20 : vector<8x32xf32>
    %cst_16 = arith.constant dense<0.000000e+00> : vector<8xf32>
    %22 = vector.multi_reduction <add>, %21, %cst_16 [1] : vector<8x32xf32> to vector<8xf32>
    %23 = vector.shape_cast %22 : vector<8xf32> to vector<8x1xf32>
    %cst_17 = arith.constant 3.200000e+01 : f32
    %24 = vector.broadcast %cst_17 : f32 to vector<8x1xf32>
    %25 = arith.divf %23, %24 : vector<8x1xf32>
    %cst_18 = arith.constant 9.99999974E-6 : f32
    %26 = vector.broadcast %cst_18 : f32 to vector<8x1xf32>
    %27 = arith.addf %25, %26 : vector<8x1xf32>
    %28 = math.rsqrt %27 : vector<8x1xf32>
    %29 = vector.broadcast %28 : vector<8x1xf32> to vector<8x32xf32>
    %30 = arith.mulf %20, %29 : vector<8x32xf32>
    %31 = vector.broadcast %9 : vector<1x32xf32> to vector<8x32xf32>
    %32 = arith.mulf %30, %31 : vector<8x32xf32>
    %33 = vector.broadcast %10 : vector<1x32xf32> to vector<8x32xf32>
    %34 = arith.addf %32, %33 : vector<8x32xf32>
    %c0_19 = arith.constant 0 : index
    %c0_20 = arith.constant 0 : index
    %35 = vector.load %arg4[%c0_19, %c0_20] : memref<32x96xf32, #tpu.memory_space<vmem>>, vector<32x96xf32>
    %cst_21 = arith.constant dense<0.000000e+00> : vector<8x96xf32>
    %36 = tpu.matmul %34, %35, %cst_21 {dimension_numbers = #tpu.dot_dimension_numbers<[1], [0], [0], [1], [0, 0, 1, 1], [], []>} : vector<8x32xf32>, vector<32x96xf32>, vector<8x96xf32> -> vector<8x96xf32>
    %cst_22 = arith.constant 0.000000e+00 : f32
    %37 = vector.broadcast %cst_22 : f32 to vector<8x32xf32>
    %38 = vector.extract_strided_slice %36 {offsets = [0, 0], sizes = [8, 8], strides = [1, 1]} : vector<8x96xf32> to vector<8x8xf32>
    %39 = vector.extract_strided_slice %36 {offsets = [0, 32], sizes = [8, 8], strides = [1, 1]} : vector<8x96xf32> to vector<8x8xf32>
    %40 = vector.extract_strided_slice %36 {offsets = [0, 64], sizes = [8, 8], strides = [1, 1]} : vector<8x96xf32> to vector<8x8xf32>
    %cst_23 = arith.constant dense<0.000000e+00> : vector<8x8xf32>
    %41 = tpu.matmul %38, %39, %cst_23 {dimension_numbers = #tpu.dot_dimension_numbers<[1], [1], [0], [0], [0, 0, 1, 0], [], []>} : vector<8x8xf32>, vector<8x8xf32>, vector<8x8xf32> -> vector<8x8xf32>
    %42 = vector.broadcast %8 : vector<1x8xf32> to vector<8x8xf32>
    %43 = arith.addf %41, %42 : vector<8x8xf32>
    %cst_24 = arith.constant dense<0xFF800000> : vector<8xf32>
    %44 = vector.multi_reduction <maximumf>, %43, %cst_24 [1] : vector<8x8xf32> to vector<8xf32>
    %45 = vector.shape_cast %44 : vector<8xf32> to vector<8x1xf32>
    %46 = vector.broadcast %45 : vector<8x1xf32> to vector<8x8xf32>
    %47 = arith.subf %43, %46 : vector<8x8xf32>
    %48 = math.exp %47 : vector<8x8xf32>
    %cst_25 = arith.constant dense<0.000000e+00> : vector<8xf32>
    %49 = vector.multi_reduction <add>, %48, %cst_25 [1] : vector<8x8xf32> to vector<8xf32>
    %50 = vector.shape_cast %49 : vector<8xf32> to vector<8x1xf32>
    %cst_26 = arith.constant 1.000000e+00 : f32
    %51 = vector.broadcast %cst_26 : f32 to vector<8x1xf32>
    %52 = arith.divf %51, %50 : vector<8x1xf32>
    %cst_27 = arith.constant dense<0.000000e+00> : vector<8x8xf32>
    %53 = tpu.matmul %48, %40, %cst_27 {dimension_numbers = #tpu.dot_dimension_numbers<[1], [0], [0], [1], [0, 0, 1, 1], [], []>} : vector<8x8xf32>, vector<8x8xf32>, vector<8x8xf32> -> vector<8x8xf32>
    %54 = vector.broadcast %52 : vector<8x1xf32> to vector<8x8xf32>
    %55 = arith.mulf %53, %54 : vector<8x8xf32>
    %c0_28 = arith.constant 0 : index
    %c0_29 = arith.constant 0 : index
    %56 = vector.load %arg5[%c0_28, %c0_29] : memref<32x32xf32, #tpu.memory_space<vmem>>, vector<8x32xf32>
    %cst_30 = arith.constant dense<0.000000e+00> : vector<8x32xf32>
    %57 = tpu.matmul %55, %56, %cst_30 {dimension_numbers = #tpu.dot_dimension_numbers<[1], [0], [0], [1], [0, 0, 1, 1], [], []>} : vector<8x8xf32>, vector<8x32xf32>, vector<8x32xf32> -> vector<8x32xf32>
    %58 = arith.addf %37, %57 : vector<8x32xf32>
    %59 = vector.extract_strided_slice %36 {offsets = [0, 8], sizes = [8, 8], strides = [1, 1]} : vector<8x96xf32> to vector<8x8xf32>
    %60 = vector.extract_strided_slice %36 {offsets = [0, 40], sizes = [8, 8], strides = [1, 1]} : vector<8x96xf32> to vector<8x8xf32>
    %61 = vector.extract_strided_slice %36 {offsets = [0, 72], sizes = [8, 8], strides = [1, 1]} : vector<8x96xf32> to vector<8x8xf32>
    %cst_31 = arith.constant dense<0.000000e+00> : vector<8x8xf32>
    %62 = tpu.matmul %59, %60, %cst_31 {dimension_numbers = #tpu.dot_dimension_numbers<[1], [1], [0], [0], [0, 0, 1, 0], [], []>} : vector<8x8xf32>, vector<8x8xf32>, vector<8x8xf32> -> vector<8x8xf32>
    %63 = vector.broadcast %8 : vector<1x8xf32> to vector<8x8xf32>
    %64 = arith.addf %62, %63 : vector<8x8xf32>
    %cst_32 = arith.constant dense<0xFF800000> : vector<8xf32>
    %65 = vector.multi_reduction <maximumf>, %64, %cst_32 [1] : vector<8x8xf32> to vector<8xf32>
    %66 = vector.shape_cast %65 : vector<8xf32> to vector<8x1xf32>
    %67 = vector.broadcast %66 : vector<8x1xf32> to vector<8x8xf32>
    %68 = arith.subf %64, %67 : vector<8x8xf32>
    %69 = math.exp %68 : vector<8x8xf32>
    %cst_33 = arith.constant dense<0.000000e+00> : vector<8xf32>
    %70 = vector.multi_reduction <add>, %69, %cst_33 [1] : vector<8x8xf32> to vector<8xf32>
    %71 = vector.shape_cast %70 : vector<8xf32> to vector<8x1xf32>
    %cst_34 = arith.constant 1.000000e+00 : f32
    %72 = vector.broadcast %cst_34 : f32 to vector<8x1xf32>
    %73 = arith.divf %72, %71 : vector<8x1xf32>
    %cst_35 = arith.constant dense<0.000000e+00> : vector<8x8xf32>
    %74 = tpu.matmul %69, %61, %cst_35 {dimension_numbers = #tpu.dot_dimension_numbers<[1], [0], [0], [1], [0, 0, 1, 1], [], []>} : vector<8x8xf32>, vector<8x8xf32>, vector<8x8xf32> -> vector<8x8xf32>
    %75 = vector.broadcast %73 : vector<8x1xf32> to vector<8x8xf32>
    %76 = arith.mulf %74, %75 : vector<8x8xf32>
    %c8 = arith.constant 8 : index
    %c0_36 = arith.constant 0 : index
    %77 = vector.load %arg5[%c8, %c0_36] : memref<32x32xf32, #tpu.memory_space<vmem>>, vector<8x32xf32>
    %cst_37 = arith.constant dense<0.000000e+00> : vector<8x32xf32>
    %78 = tpu.matmul %76, %77, %cst_37 {dimension_numbers = #tpu.dot_dimension_numbers<[1], [0], [0], [1], [0, 0, 1, 1], [], []>} : vector<8x8xf32>, vector<8x32xf32>, vector<8x32xf32> -> vector<8x32xf32>
    %79 = arith.addf %58, %78 : vector<8x32xf32>
    %80 = vector.extract_strided_slice %36 {offsets = [0, 16], sizes = [8, 8], strides = [1, 1]} : vector<8x96xf32> to vector<8x8xf32>
    %81 = vector.extract_strided_slice %36 {offsets = [0, 48], sizes = [8, 8], strides = [1, 1]} : vector<8x96xf32> to vector<8x8xf32>
    %82 = vector.extract_strided_slice %36 {offsets = [0, 80], sizes = [8, 8], strides = [1, 1]} : vector<8x96xf32> to vector<8x8xf32>
    %cst_38 = arith.constant dense<0.000000e+00> : vector<8x8xf32>
    %83 = tpu.matmul %80, %81, %cst_38 {dimension_numbers = #tpu.dot_dimension_numbers<[1], [1], [0], [0], [0, 0, 1, 0], [], []>} : vector<8x8xf32>, vector<8x8xf32>, vector<8x8xf32> -> vector<8x8xf32>
    %84 = vector.broadcast %8 : vector<1x8xf32> to vector<8x8xf32>
    %85 = arith.addf %83, %84 : vector<8x8xf32>
    %cst_39 = arith.constant dense<0xFF800000> : vector<8xf32>
    %86 = vector.multi_reduction <maximumf>, %85, %cst_39 [1] : vector<8x8xf32> to vector<8xf32>
    %87 = vector.shape_cast %86 : vector<8xf32> to vector<8x1xf32>
    %88 = vector.broadcast %87 : vector<8x1xf32> to vector<8x8xf32>
    %89 = arith.subf %85, %88 : vector<8x8xf32>
    %90 = math.exp %89 : vector<8x8xf32>
    %cst_40 = arith.constant dense<0.000000e+00> : vector<8xf32>
    %91 = vector.multi_reduction <add>, %90, %cst_40 [1] : vector<8x8xf32> to vector<8xf32>
    %92 = vector.shape_cast %91 : vector<8xf32> to vector<8x1xf32>
    %cst_41 = arith.constant 1.000000e+00 : f32
    %93 = vector.broadcast %cst_41 : f32 to vector<8x1xf32>
    %94 = arith.divf %93, %92 : vector<8x1xf32>
    %cst_42 = arith.constant dense<0.000000e+00> : vector<8x8xf32>
    %95 = tpu.matmul %90, %82, %cst_42 {dimension_numbers = #tpu.dot_dimension_numbers<[1], [0], [0], [1], [0, 0, 1, 1], [], []>} : vector<8x8xf32>, vector<8x8xf32>, vector<8x8xf32> -> vector<8x8xf32>
    %96 = vector.broadcast %94 : vector<8x1xf32> to vector<8x8xf32>
    %97 = arith.mulf %95, %96 : vector<8x8xf32>
    %c16 = arith.constant 16 : index
    %c0_43 = arith.constant 0 : index
    %98 = vector.load %arg5[%c16, %c0_43] : memref<32x32xf32, #tpu.memory_space<vmem>>, vector<8x32xf32>
    %cst_44 = arith.constant dense<0.000000e+00> : vector<8x32xf32>
    %99 = tpu.matmul %97, %98, %cst_44 {dimension_numbers = #tpu.dot_dimension_numbers<[1], [0], [0], [1], [0, 0, 1, 1], [], []>} : vector<8x8xf32>, vector<8x32xf32>, vector<8x32xf32> -> vector<8x32xf32>
    %100 = arith.addf %79, %99 : vector<8x32xf32>
    %101 = vector.extract_strided_slice %36 {offsets = [0, 24], sizes = [8, 8], strides = [1, 1]} : vector<8x96xf32> to vector<8x8xf32>
    %102 = vector.extract_strided_slice %36 {offsets = [0, 56], sizes = [8, 8], strides = [1, 1]} : vector<8x96xf32> to vector<8x8xf32>
    %103 = vector.extract_strided_slice %36 {offsets = [0, 88], sizes = [8, 8], strides = [1, 1]} : vector<8x96xf32> to vector<8x8xf32>
    %cst_45 = arith.constant dense<0.000000e+00> : vector<8x8xf32>
    %104 = tpu.matmul %101, %102, %cst_45 {dimension_numbers = #tpu.dot_dimension_numbers<[1], [1], [0], [0], [0, 0, 1, 0], [], []>} : vector<8x8xf32>, vector<8x8xf32>, vector<8x8xf32> -> vector<8x8xf32>
    %105 = vector.broadcast %8 : vector<1x8xf32> to vector<8x8xf32>
    %106 = arith.addf %104, %105 : vector<8x8xf32>
    %cst_46 = arith.constant dense<0xFF800000> : vector<8xf32>
    %107 = vector.multi_reduction <maximumf>, %106, %cst_46 [1] : vector<8x8xf32> to vector<8xf32>
    %108 = vector.shape_cast %107 : vector<8xf32> to vector<8x1xf32>
    %109 = vector.broadcast %108 : vector<8x1xf32> to vector<8x8xf32>
    %110 = arith.subf %106, %109 : vector<8x8xf32>
    %111 = math.exp %110 : vector<8x8xf32>
    %cst_47 = arith.constant dense<0.000000e+00> : vector<8xf32>
    %112 = vector.multi_reduction <add>, %111, %cst_47 [1] : vector<8x8xf32> to vector<8xf32>
    %113 = vector.shape_cast %112 : vector<8xf32> to vector<8x1xf32>
    %cst_48 = arith.constant 1.000000e+00 : f32
    %114 = vector.broadcast %cst_48 : f32 to vector<8x1xf32>
    %115 = arith.divf %114, %113 : vector<8x1xf32>
    %cst_49 = arith.constant dense<0.000000e+00> : vector<8x8xf32>
    %116 = tpu.matmul %111, %103, %cst_49 {dimension_numbers = #tpu.dot_dimension_numbers<[1], [0], [0], [1], [0, 0, 1, 1], [], []>} : vector<8x8xf32>, vector<8x8xf32>, vector<8x8xf32> -> vector<8x8xf32>
    %117 = vector.broadcast %115 : vector<8x1xf32> to vector<8x8xf32>
    %118 = arith.mulf %116, %117 : vector<8x8xf32>
    %c24 = arith.constant 24 : index
    %c0_50 = arith.constant 0 : index
    %119 = vector.load %arg5[%c24, %c0_50] : memref<32x32xf32, #tpu.memory_space<vmem>>, vector<8x32xf32>
    %cst_51 = arith.constant dense<0.000000e+00> : vector<8x32xf32>
    %120 = tpu.matmul %118, %119, %cst_51 {dimension_numbers = #tpu.dot_dimension_numbers<[1], [0], [0], [1], [0, 0, 1, 1], [], []>} : vector<8x8xf32>, vector<8x32xf32>, vector<8x32xf32> -> vector<8x32xf32>
    %121 = arith.addf %100, %120 : vector<8x32xf32>
    %122 = vector.broadcast %13 : vector<1x32xf32> to vector<8x32xf32>
    %123 = arith.addf %121, %122 : vector<8x32xf32>
    %124 = arith.addf %1, %123 : vector<8x32xf32>
    %cst_52 = arith.constant dense<0.000000e+00> : vector<8xf32>
    %125 = vector.multi_reduction <add>, %124, %cst_52 [1] : vector<8x32xf32> to vector<8xf32>
    %126 = vector.shape_cast %125 : vector<8xf32> to vector<8x1xf32>
    %cst_53 = arith.constant 3.200000e+01 : f32
    %127 = vector.broadcast %cst_53 : f32 to vector<8x1xf32>
    %128 = arith.divf %126, %127 : vector<8x1xf32>
    %129 = vector.broadcast %128 : vector<8x1xf32> to vector<8x32xf32>
    %130 = arith.subf %124, %129 : vector<8x32xf32>
    %131 = arith.mulf %130, %130 : vector<8x32xf32>
    %cst_54 = arith.constant dense<0.000000e+00> : vector<8xf32>
    %132 = vector.multi_reduction <add>, %131, %cst_54 [1] : vector<8x32xf32> to vector<8xf32>
    %133 = vector.shape_cast %132 : vector<8xf32> to vector<8x1xf32>
    %cst_55 = arith.constant 3.200000e+01 : f32
    %134 = vector.broadcast %cst_55 : f32 to vector<8x1xf32>
    %135 = arith.divf %133, %134 : vector<8x1xf32>
    %cst_56 = arith.constant 9.99999974E-6 : f32
    %136 = vector.broadcast %cst_56 : f32 to vector<8x1xf32>
    %137 = arith.addf %135, %136 : vector<8x1xf32>
    %138 = math.rsqrt %137 : vector<8x1xf32>
    %139 = vector.broadcast %138 : vector<8x1xf32> to vector<8x32xf32>
    %140 = arith.mulf %130, %139 : vector<8x32xf32>
    %141 = vector.broadcast %11 : vector<1x32xf32> to vector<8x32xf32>
    %142 = arith.mulf %140, %141 : vector<8x32xf32>
    %143 = vector.broadcast %12 : vector<1x32xf32> to vector<8x32xf32>
    %144 = arith.addf %142, %143 : vector<8x32xf32>
    %c0_57 = arith.constant 0 : index
    %c0_58 = arith.constant 0 : index
    %145 = vector.load %arg6[%c0_57, %c0_58] : memref<32x128xf32, #tpu.memory_space<vmem>>, vector<32x128xf32>
    %cst_59 = arith.constant dense<0.000000e+00> : vector<8x128xf32>
    %146 = tpu.matmul %144, %145, %cst_59 {dimension_numbers = #tpu.dot_dimension_numbers<[1], [0], [0], [1], [0, 0, 1, 1], [], []>} : vector<8x32xf32>, vector<32x128xf32>, vector<8x128xf32> -> vector<8x128xf32>
    %c0_60 = arith.constant 0 : index
    %c0_61 = arith.constant 0 : index
    %147 = vector.load %arg7[%c0_60, %c0_61] : memref<1x128xf32, #tpu.memory_space<vmem>>, vector<1x128xf32>
    %148 = vector.broadcast %147 : vector<1x128xf32> to vector<8x128xf32>
    %149 = arith.addf %146, %148 : vector<8x128xf32>
    %cst_62 = arith.constant 5.000000e-01 : f32
    %150 = vector.broadcast %cst_62 : f32 to vector<8x128xf32>
    %151 = arith.mulf %150, %149 : vector<8x128xf32>
    %cst_63 = arith.constant 0.707106769 : f32
    %152 = vector.broadcast %cst_63 : f32 to vector<8x128xf32>
    %153 = arith.mulf %149, %152 : vector<8x128xf32>
    %154 = math.absf %153 : vector<8x128xf32>
    %cst_64 = arith.constant 0.327591091 : f32
    %155 = vector.broadcast %cst_64 : f32 to vector<8x128xf32>
    %156 = arith.mulf %155, %154 : vector<8x128xf32>
    %cst_65 = arith.constant 1.000000e+00 : f32
    %157 = vector.broadcast %cst_65 : f32 to vector<8x128xf32>
    %158 = arith.addf %157, %156 : vector<8x128xf32>
    %cst_66 = arith.constant 1.000000e+00 : f32
    %159 = vector.broadcast %cst_66 : f32 to vector<8x128xf32>
    %160 = arith.divf %159, %158 : vector<8x128xf32>
    %cst_67 = arith.constant 1.06140542 : f32
    %161 = vector.broadcast %cst_67 : f32 to vector<8x128xf32>
    %162 = arith.mulf %161, %160 : vector<8x128xf32>
    %cst_68 = arith.constant -1.45315206 : f32
    %163 = vector.broadcast %cst_68 : f32 to vector<8x128xf32>
    %164 = arith.addf %162, %163 : vector<8x128xf32>
    %165 = arith.mulf %164, %160 : vector<8x128xf32>
    %cst_69 = arith.constant 1.42141378 : f32
    %166 = vector.broadcast %cst_69 : f32 to vector<8x128xf32>
    %167 = arith.addf %165, %166 : vector<8x128xf32>
    %168 = arith.mulf %167, %160 : vector<8x128xf32>
    %cst_70 = arith.constant -0.284496725 : f32
    %169 = vector.broadcast %cst_70 : f32 to vector<8x128xf32>
    %170 = arith.addf %168, %169 : vector<8x128xf32>
    %171 = arith.mulf %170, %160 : vector<8x128xf32>
    %cst_71 = arith.constant 0.254829586 : f32
    %172 = vector.broadcast %cst_71 : f32 to vector<8x128xf32>
    %173 = arith.addf %171, %172 : vector<8x128xf32>
    %174 = arith.mulf %173, %160 : vector<8x128xf32>
    %cst_72 = arith.constant 0.000000e+00 : f32
    %175 = vector.broadcast %cst_72 : f32 to vector<8x128xf32>
    %176 = arith.subf %175, %154 : vector<8x128xf32>
    %177 = arith.mulf %176, %154 : vector<8x128xf32>
    %178 = math.exp %177 : vector<8x128xf32>
    %179 = arith.mulf %174, %178 : vector<8x128xf32>
    %cst_73 = arith.constant 1.000000e+00 : f32
    %180 = vector.broadcast %cst_73 : f32 to vector<8x128xf32>
    %181 = arith.subf %180, %179 : vector<8x128xf32>
    %cst_74 = arith.constant 0.000000e+00 : f32
    %182 = vector.broadcast %cst_74 : f32 to vector<8x128xf32>
    %183 = arith.cmpf oge, %153, %182 : vector<8x128xf32>
    %cst_75 = arith.constant 0.000000e+00 : f32
    %184 = vector.broadcast %cst_75 : f32 to vector<8x128xf32>
    %185 = arith.subf %184, %181 : vector<8x128xf32>
    %186 = arith.select %183, %181, %185 : vector<8x128xi1>, vector<8x128xf32>
    %cst_76 = arith.constant 1.000000e+00 : f32
    %187 = vector.broadcast %cst_76 : f32 to vector<8x128xf32>
    %188 = arith.addf %187, %186 : vector<8x128xf32>
    %189 = arith.mulf %151, %188 : vector<8x128xf32>
    %c0_77 = arith.constant 0 : index
    %c0_78 = arith.constant 0 : index
    %190 = vector.load %arg8[%c0_77, %c0_78] : memref<128x32xf32, #tpu.memory_space<vmem>>, vector<128x32xf32>
    %cst_79 = arith.constant dense<0.000000e+00> : vector<8x32xf32>
    %191 = tpu.matmul %189, %190, %cst_79 {dimension_numbers = #tpu.dot_dimension_numbers<[1], [0], [0], [1], [0, 0, 1, 1], [], []>} : vector<8x128xf32>, vector<128x32xf32>, vector<8x32xf32> -> vector<8x32xf32>
    %192 = vector.broadcast %14 : vector<1x32xf32> to vector<8x32xf32>
    %193 = arith.addf %191, %192 : vector<8x32xf32>
    %194 = arith.addf %124, %193 : vector<8x32xf32>
    %c0_80 = arith.constant 0 : index
    %c0_81 = arith.constant 0 : index
    %c0_82 = arith.constant 0 : index
    %195 = vector.load %arg9[%c0_80, %c0_81, %c0_82] : memref<1x8x32xf32, #tpu.memory_space<vmem>>, vector<1x8x32xf32>
    %196 = vector.shape_cast %195 : vector<1x8x32xf32> to vector<8x32xf32>
    %197 = vector.shape_cast %194 : vector<8x32xf32> to vector<1x8x32xf32>
    tpu.vector_store %arg9[%c0_80, %c0_81, %c0_82], %197 {strides = array<i32>} : memref<1x8x32xf32, #tpu.memory_space<vmem>>, vector<1x8x32xf32>,
    return
  }
  func.func @transform_0(%arg0: i32) -> (i32, i32, i32) {
    %c0_i32 = arith.constant 0 : i32
    %c0_i32_0 = arith.constant 0 : i32
    %c0_i32_1 = arith.constant 0 : i32
    return %arg0, %c0_i32, %c0_i32_0 : i32, i32, i32
  }
  func.func @transform_1(%arg0: i32) -> (i32, i32, i32) {
    %c0_i32 = arith.constant 0 : i32
    %c0_i32_0 = arith.constant 0 : i32
    %c0_i32_1 = arith.constant 0 : i32
    return %arg0, %c0_i32, %c0_i32_0 : i32, i32, i32
  }
  func.func @transform_2(%arg0: i32) -> (i32, i32) {
    %c0_i32 = arith.constant 0 : i32
    %c0_i32_0 = arith.constant 0 : i32
    %c0_i32_1 = arith.constant 0 : i32
    return %c0_i32, %c0_i32_0 : i32, i32
  }
  func.func @transform_3(%arg0: i32) -> (i32, i32) {
    %c0_i32 = arith.constant 0 : i32
    %c0_i32_0 = arith.constant 0 : i32
    %c0_i32_1 = arith.constant 0 : i32
    return %c0_i32, %c0_i32_0 : i32, i32
  }
  func.func @transform_4(%arg0: i32) -> (i32, i32) {
    %c0_i32 = arith.constant 0 : i32
    %c0_i32_0 = arith.constant 0 : i32
    %c0_i32_1 = arith.constant 0 : i32
    return %c0_i32, %c0_i32_0 : i32, i32
  }
  func.func @transform_5(%arg0: i32) -> (i32, i32) {
    %c0_i32 = arith.constant 0 : i32
    %c0_i32_0 = arith.constant 0 : i32
    %c0_i32_1 = arith.constant 0 : i32
    return %c0_i32, %c0_i32_0 : i32, i32
  }
  func.func @transform_6(%arg0: i32) -> (i32, i32) {
    %c0_i32 = arith.constant 0 : i32
    %c0_i32_0 = arith.constant 0 : i32
    %c0_i32_1 = arith.constant 0 : i32
    return %c0_i32, %c0_i32_0 : i32, i32
  }
  func.func @transform_7(%arg0: i32) -> (i32, i32) {
    %c0_i32 = arith.constant 0 : i32
    %c0_i32_0 = arith.constant 0 : i32
    %c0_i32_1 = arith.constant 0 : i32
    return %c0_i32, %c0_i32_0 : i32, i32
  }
  func.func @transform_8(%arg0: i32) -> (i32, i32, i32) {
    %c0_i32 = arith.constant 0 : i32
    %c0_i32_0 = arith.constant 0 : i32
    %c0_i32_1 = arith.constant 0 : i32
    return %arg0, %c0_i32, %c0_i32_0 : i32, i32, i32
  }
}

</mosaic_0001>

<llo_original>
// kernel: tpu_custom_call.1
$region0: #{tpu_custom_call.1}
  #allocation0 [shape = 'u32[]', space=smem, size = 0x4, offset = 0x4, fixed_abs, tag = 'smem constant byte address 0x4 - core index']
  #allocation1 [shape = 'u32[144,128]{1,0:T(1,128)}', space=vmem, size = 0x12000, scoped, tag = 'internal scratch']
  %s0 = inlined_call_operand.vmem [shape: f32[2,8,32], index: 0, kind: input, shape index: {}]
  %s1 = inlined_call_operand.vmem [shape: f32[2,1,8], index: 1, kind: input, shape index: {}]
  %s2 = inlined_call_operand.vmem [shape: f32[6,32], index: 2, kind: input, shape index: {}]
  %s3 = inlined_call_operand.vmem [shape: f32[32,96], index: 3, kind: input, shape index: {}]
  %s4 = inlined_call_operand.vmem [shape: f32[32,32], index: 4, kind: input, shape index: {}]
  %s5 = inlined_call_operand.vmem [shape: f32[32,128], index: 5, kind: input, shape index: {}]
  %s6 = inlined_call_operand.vmem [shape: f32[1,128], index: 6, kind: input, shape index: {}]
  %s7 = inlined_call_operand.vmem [shape: f32[128,32], index: 7, kind: input, shape index: {}]
  %s8 = inlined_call_operand.hbm [shape: f32[2,8,32], index: 8, kind: output, shape index: {}]
  %s9 = sld [smem:[#allocation0]]
  $region65: #{tpu_custom_call.1} parent=0
    _
  %s11 = ssub.s32 1, %s9
  %s12 = scalar_select 0, %s11, %s9
  $region1: #{tpu_custom_call.1} parent=0
    #allocation2 [shape = 'u8[8192]{0}', space=vmem, size = 0x2000, scoped, tag = 'output window, operand 0']
    #allocation3 [shape = 's32[2]{0}', space=sflag, size = 0x8, scoped, tag = 'scoped memory for tpu_custom_call.1']
    %13 = vsyncpa [#allocation3], 0
    %s14 = scalar_lea.sflag [#allocation3], 1
    %15 = vsyncpa %s14, 0
    loop: start=0, step=1, limit=4
    $region2: #{tpu_custom_call.1} parent=1 // loop_pre_header
      _
    $region3: #{tpu_custom_call.1} parent=1 // loop_header
      %s17 = sphi 0, %s21
      %p18 = scmp.ge.s32.totalorder %s17, 4
      %s27 = sphi 0, %s29
      %s30 = sphi 0, %s27
      %s31 = sphi 0, %s30
      %s47 = sphi 0, %s31
      %s53 = sphi 0, %s55
      %s56 = sphi 0, %s53
      %s57 = sphi 0, %s56
      %s73 = sphi 0, %s57
      %s77 = sphi 0, %s77
      %s79 = sphi 0, %s77
      %s80 = sphi 0, %s79
      %s94 = sphi 0, %s80
      %s98 = sphi 0, %s98
      %s100 = sphi 0, %s98
      %s101 = sphi 0, %s100
      %s115 = sphi 0, %s101
      %s119 = sphi 0, %s119
      %s121 = sphi 0, %s119
      %s122 = sphi 0, %s121
      %s136 = sphi 0, %s122
      %s140 = sphi 0, %s140
      %s142 = sphi 0, %s140
      %s143 = sphi 0, %s142
      %s157 = sphi 0, %s143
      %s161 = sphi 0, %s161
      %s163 = sphi 0, %s161
      %s164 = sphi 0, %s163
      %s178 = sphi 0, %s164
      %s182 = sphi 0, %s182
      %s184 = sphi 0, %s182
      %s185 = sphi 0, %s184
      %s199 = sphi 0, %s185
      %s205 = sphi 0, %s207
      %s208 = sphi 0, %s205
      %s209 = sphi 0, %s208
      %s225 = sphi 0, %s209
    $region4: #{tpu_custom_call.1} parent=1 // loop_header_branch
      %20 = sbr.rel (%p18) target = $region8
    $region5: #{tpu_custom_call.1} parent=1 // loop_body
      %s22 = ssub.s32 %s17, 1
      %s23 = ssub.s32 %s17, 2
      %s24 = sadd.s32 %s17, 1
      %s25 = ssub.s32 %s17, %s24
      %p26 = scmp.eq.s32.totalorder %s25, 0
      %s28 = sadd.s32 %s27, 1
      %s29 = scalar_select %p26, %s27, %s28
      %p32 = pneg %p26
      %p33 = scmp.eq.s32.totalorder %s17, 1
      %p34 = por %p32, %p33
      %p35 = scmp.ne.s32.totalorder %s27, %s30
      %p36 = scmp.eq.s32.totalorder %s17, 0
      %p37 = por %p35, %p36
      %p38 = scmp.ne.s32.totalorder %s27, %s30
      %p39 = scmp.eq.s32.totalorder %s22, 1
      %p40 = por %p38, %p39
      %p41 = scmp.ne.s32.totalorder %s30, %s31
      %p42 = scmp.eq.s32.totalorder %s22, 0
      %p43 = por %p41, %p42
      %p44 = scmp.ne.s32.totalorder %s30, %s31
      %p45 = scmp.eq.s32.totalorder %s23, 1
      %p46 = por %p44, %p45
      %p48 = scmp.ne.s32.totalorder %s31, %s47
      %p49 = scmp.eq.s32.totalorder %s23, 0
      %p50 = por %p48, %p49
      %s51 = ssub.s32 %s17, %s24
      %p52 = scmp.eq.s32.totalorder %s51, 0
      %s54 = sadd.s32 %s53, 1
      %s55 = scalar_select %p52, %s53, %s54
      %p58 = pneg %p52
      %p59 = scmp.eq.s32.totalorder %s17, 1
      %p60 = por %p58, %p59
      %p61 = scmp.ne.s32.totalorder %s53, %s56
      %p62 = scmp.eq.s32.totalorder %s17, 0
      %p63 = por %p61, %p62
      %p64 = scmp.ne.s32.totalorder %s53, %s56
      %p65 = scmp.eq.s32.totalorder %s22, 1
      %p66 = por %p64, %p65
      %p67 = scmp.ne.s32.totalorder %s56, %s57
      %p68 = scmp.eq.s32.totalorder %s22, 0
      %p69 = por %p67, %p68
      %p70 = scmp.ne.s32.totalorder %s56, %s57
      %p71 = scmp.eq.s32.totalorder %s23, 1
      %p72 = por %p70, %p71
      %p74 = scmp.ne.s32.totalorder %s57, %s73
      %p75 = scmp.eq.s32.totalorder %s23, 0
      %p76 = por %p74, %p75
      %s78 = sadd.s32 %s77, 1
      %p81 = scmp.eq.s32.totalorder %s17, 1
      %p82 = scmp.ne.s32.totalorder %s77, %s79
      %p83 = scmp.eq.s32.totalorder %s17, 0
      %p84 = por %p82, %p83
      %p85 = scmp.ne.s32.totalorder %s77, %s79
      %p86 = scmp.eq.s32.totalorder %s22, 1
      %p87 = por %p85, %p86
      %p88 = scmp.ne.s32.totalorder %s79, %s80
      %p89 = scmp.eq.s32.totalorder %s22, 0
      %p90 = por %p88, %p89
      %p91 = scmp.ne.s32.totalorder %s79, %s80
      %p92 = scmp.eq.s32.totalorder %s23, 1
      %p93 = por %p91, %p92
      %p95 = scmp.ne.s32.totalorder %s80, %s94
      %p96 = scmp.eq.s32.totalorder %s23, 0
      %p97 = por %p95, %p96
      %s99 = sadd.s32 %s98, 1
      %p102 = scmp.eq.s32.totalorder %s17, 1
      %p103 = scmp.ne.s32.totalorder %s98, %s100
      %p104 = scmp.eq.s32.totalorder %s17, 0
      %p105 = por %p103, %p104
      %p106 = scmp.ne.s32.totalorder %s98, %s100
      %p107 = scmp.eq.s32.totalorder %s22, 1
      %p108 = por %p106, %p107
      %p109 = scmp.ne.s32.totalorder %s100, %s101
      %p110 = scmp.eq.s32.totalorder %s22, 0
      %p111 = por %p109, %p110
      %p112 = scmp.ne.s32.totalorder %s100, %s101
      %p113 = scmp.eq.s32.totalorder %s23, 1
      %p114 = por %p112, %p113
      %p116 = scmp.ne.s32.totalorder %s101, %s115
      %p117 = scmp.eq.s32.totalorder %s23, 0
      %p118 = por %p116, %p117
      %s120 = sadd.s32 %s119, 1
      %p123 = scmp.eq.s32.totalorder %s17, 1
      %p124 = scmp.ne.s32.totalorder %s119, %s121
      %p125 = scmp.eq.s32.totalorder %s17, 0
      %p126 = por %p124, %p125
      %p127 = scmp.ne.s32.totalorder %s119, %s121
      %p128 = scmp.eq.s32.totalorder %s22, 1
      %p129 = por %p127, %p128
      %p130 = scmp.ne.s32.totalorder %s121, %s122
      %p131 = scmp.eq.s32.totalorder %s22, 0
      %p132 = por %p130, %p131
      %p133 = scmp.ne.s32.totalorder %s121, %s122
      %p134 = scmp.eq.s32.totalorder %s23, 1
      %p135 = por %p133, %p134
      %p137 = scmp.ne.s32.totalorder %s122, %s136
      %p138 = scmp.eq.s32.totalorder %s23, 0
      %p139 = por %p137, %p138
      %s141 = sadd.s32 %s140, 1
      %p144 = scmp.eq.s32.totalorder %s17, 1
      %p145 = scmp.ne.s32.totalorder %s140, %s142
      %p146 = scmp.eq.s32.totalorder %s17, 0
      %p147 = por %p145, %p146
      %p148 = scmp.ne.s32.totalorder %s140, %s142
      %p149 = scmp.eq.s32.totalorder %s22, 1
      %p150 = por %p148, %p149
      %p151 = scmp.ne.s32.totalorder %s142, %s143
      %p152 = scmp.eq.s32.totalorder %s22, 0
      %p153 = por %p151, %p152
      %p154 = scmp.ne.s32.totalorder %s142, %s143
      %p155 = scmp.eq.s32.totalorder %s23, 1
      %p156 = por %p154, %p155
      %p158 = scmp.ne.s32.totalorder %s143, %s157
      %p159 = scmp.eq.s32.totalorder %s23, 0
      %p160 = por %p158, %p159
      %s162 = sadd.s32 %s161, 1
      %p165 = scmp.eq.s32.totalorder %s17, 1
      %p166 = scmp.ne.s32.totalorder %s161, %s163
      %p167 = scmp.eq.s32.totalorder %s17, 0
      %p168 = por %p166, %p167
      %p169 = scmp.ne.s32.totalorder %s161, %s163
      %p170 = scmp.eq.s32.totalorder %s22, 1
      %p171 = por %p169, %p170
      %p172 = scmp.ne.s32.totalorder %s163, %s164
      %p173 = scmp.eq.s32.totalorder %s22, 0
      %p174 = por %p172, %p173
      %p175 = scmp.ne.s32.totalorder %s163, %s164
      %p176 = scmp.eq.s32.totalorder %s23, 1
      %p177 = por %p175, %p176
      %p179 = scmp.ne.s32.totalorder %s164, %s178
      %p180 = scmp.eq.s32.totalorder %s23, 0
      %p181 = por %p179, %p180
      %s183 = sadd.s32 %s182, 1
      %p186 = scmp.eq.s32.totalorder %s17, 1
      %p187 = scmp.ne.s32.totalorder %s182, %s184
      %p188 = scmp.eq.s32.totalorder %s17, 0
      %p189 = por %p187, %p188
      %p190 = scmp.ne.s32.totalorder %s182, %s184
      %p191 = scmp.eq.s32.totalorder %s22, 1
      %p192 = por %p190, %p191
      %p193 = scmp.ne.s32.totalorder %s184, %s185
      %p194 = scmp.eq.s32.totalorder %s22, 0
      %p195 = por %p193, %p194
      %p196 = scmp.ne.s32.totalorder %s184, %s185
      %p197 = scmp.eq.s32.totalorder %s23, 1
      %p198 = por %p196, %p197
      %p200 = scmp.ne.s32.totalorder %s185, %s199
      %p201 = scmp.eq.s32.totalorder %s23, 0
      %p202 = por %p200, %p201
      %s203 = ssub.s32 %s17, %s24
      %p204 = scmp.eq.s32.totalorder %s203, 0
      %s206 = sadd.s32 %s205, 1
      %s207 = scalar_select %p204, %s205, %s206
      %p210 = pneg %p204
      %p211 = scmp.eq.s32.totalorder %s17, 1
      %p212 = por %p210, %p211
      %p213 = scmp.ne.s32.totalorder %s205, %s208
      %p214 = scmp.eq.s32.totalorder %s17, 0
      %p215 = por %p213, %p214
      %p216 = scmp.ne.s32.totalorder %s205, %s208
      %p217 = scmp.eq.s32.totalorder %s22, 1
      %p218 = por %p216, %p217
      %p219 = scmp.ne.s32.totalorder %s208, %s209
      %p220 = scmp.eq.s32.totalorder %s22, 0
      %p221 = por %p219, %p220
      %p222 = scmp.ne.s32.totalorder %s208, %s209
      %p223 = scmp.eq.s32.totalorder %s23, 1
      %p224 = por %p222, %p223
      %p226 = scmp.ne.s32.totalorder %s209, %s225
      %p227 = scmp.eq.s32.totalorder %s23, 0
      %p228 = por %p226, %p227
      %p229 = scmp.le.s32.totalorder 1, %s17
      %p230 = scmp.lt.s32.totalorder %s17, 3
      %p231 = pnand %p229, %p230
      %p232 = pneg %p231
      // Predicated region
      $region9: #{tpu_custom_call.1} parent=5 // pred_check
        _
      $region10: #{tpu_custom_call.1} parent=5 // pred_check_branch
        %234 = sbr.rel (%p231) target = $region12
      $region11: #{tpu_custom_call.1} parent=5 // pred_region
        %s235 = ssub.s32 %s17, 1
        // Predicated region
        $region13: #{tpu_custom_call.1} parent=11 // pred_check
          %p236 = pneg %p90
        $region14: #{tpu_custom_call.1} parent=11 // pred_check_branch
          %238 = sbr.rel (%p236) target = $region16
        $region15: #{tpu_custom_call.1} parent=11 // pred_region
          _
        $region16: #{tpu_custom_call.1} parent=11 // pred_fallthru
          _
        // Predicated region
        $region17: #{tpu_custom_call.1} parent=11 // pred_check
          %p239 = pneg %p111
        $region18: #{tpu_custom_call.1} parent=11 // pred_check_branch
          %241 = sbr.rel (%p239) target = $region20
        $region19: #{tpu_custom_call.1} parent=11 // pred_region
          _
        $region20: #{tpu_custom_call.1} parent=11 // pred_fallthru
          _
        // Predicated region
        $region21: #{tpu_custom_call.1} parent=11 // pred_check
          %p242 = pneg %p132
        $region22: #{tpu_custom_call.1} parent=11 // pred_check_branch
          %244 = sbr.rel (%p242) target = $region24
        $region23: #{tpu_custom_call.1} parent=11 // pred_region
          _
        $region24: #{tpu_custom_call.1} parent=11 // pred_fallthru
          _
        // Predicated region
        $region25: #{tpu_custom_call.1} parent=11 // pred_check
          %p245 = pneg %p153
        $region26: #{tpu_custom_call.1} parent=11 // pred_check_branch
          %247 = sbr.rel (%p245) target = $region28
        $region27: #{tpu_custom_call.1} parent=11 // pred_region
          _
        $region28: #{tpu_custom_call.1} parent=11 // pred_fallthru
          _
        // Predicated region
        $region29: #{tpu_custom_call.1} parent=11 // pred_check
          %p248 = pneg %p174
        $region30: #{tpu_custom_call.1} parent=11 // pred_check_branch
          %250 = sbr.rel (%p248) target = $region32
        $region31: #{tpu_custom_call.1} parent=11 // pred_region
          _
        $region32: #{tpu_custom_call.1} parent=11 // pred_fallthru
          _
        // Predicated region
        $region33: #{tpu_custom_call.1} parent=11 // pred_check
          %p251 = pneg %p195
        $region34: #{tpu_custom_call.1} parent=11 // pred_check_branch
          %253 = sbr.rel (%p251) target = $region36
        $region35: #{tpu_custom_call.1} parent=11 // pred_region
          _
        $region36: #{tpu_custom_call.1} parent=11 // pred_fallthru
          _
      $region12: #{tpu_custom_call.1} parent=5 // pred_fallthru
        _
      %p254 = scmp.lt.s32.totalorder %s17, 2
      // Predicated region
      $region37: #{tpu_custom_call.1} parent=5 // pred_check
        %p255 = pneg %p254
      $region38: #{tpu_custom_call.1} parent=5 // pred_check_branch
        %257 = sbr.rel (%p255) target = $region40
      $region39: #{tpu_custom_call.1} parent=5 // pred_region
        // Predicated region
        $region41: #{tpu_custom_call.1} parent=39 // pred_check
          %p258 = pneg %p37
        $region42: #{tpu_custom_call.1} parent=39 // pred_check_branch
          %260 = sbr.rel (%p258) target = $region44
        $region43: #{tpu_custom_call.1} parent=39 // pred_region
          %p261 = scmp.lt.s32.totalorder %s17, 1
          %s262 = scalar_select %p261, %s17, 1
          %s263 = smul.addr %s262, 8
          %s264 = scalar_lea.vmem %s0, %s263
        $region44: #{tpu_custom_call.1} parent=39 // pred_fallthru
          _
        // Predicated region
        $region45: #{tpu_custom_call.1} parent=39 // pred_check
          %p265 = pneg %p63
        $region46: #{tpu_custom_call.1} parent=39 // pred_check_branch
          %267 = sbr.rel (%p265) target = $region48
        $region47: #{tpu_custom_call.1} parent=39 // pred_region
          %p268 = scmp.lt.s32.totalorder %s17, 1
          %s269 = scalar_select %p268, %s17, 1
          %s270 = scalar_lea.vmem %s1, %s269
        $region48: #{tpu_custom_call.1} parent=39 // pred_fallthru
          _
      $region40: #{tpu_custom_call.1} parent=5 // pred_fallthru
        _
      %p271 = scmp.le.s32.totalorder 1, %s17
      %p272 = scmp.lt.s32.totalorder %s17, 3
      %p273 = pnand %p271, %p272
      %p274 = pneg %p273
      // Predicated region
      $region49: #{tpu_custom_call.1} parent=5 // pred_check
        _
      $region50: #{tpu_custom_call.1} parent=5 // pred_check_branch
        %276 = sbr.rel (%p273) target = $region52
      $region51: #{tpu_custom_call.1} parent=5 // pred_region
        %s277 = ssub.s32 %s17, 1
        %p278 = scmp.lt.s32.totalorder %s22, 1
        %s279 = scalar_select %p278, %s22, 1
        %s280 = smul.addr %s279, 8
        %s281 = scalar_lea.vmem %s0, %s280
        %p282 = pneg %p43
        %p283 = pneg %p40
        %p284 = scmp.lt.s32.totalorder %s22, 1
        %s285 = scalar_select %p284, %s22, 1
        %s286 = scalar_lea.vmem %s1, %s285
        %p287 = pneg %p69
        %p288 = pneg %p66
        %p289 = pneg %p90
        %p290 = pneg %p87
        %p291 = pneg %p111
        %p292 = pneg %p108
        %p293 = pneg %p132
        %p294 = pneg %p129
        %p295 = pneg %p153
        %p296 = pneg %p150
        %p297 = pneg %p174
        %p298 = pneg %p171
        %p299 = pneg %p195
        %p300 = pneg %p192
        %p301 = pneg %p221
        %p302 = pneg %p218
        %s303 = sand.u32 %s208, 1
        %s304 = scalar_lea.sflag [#allocation3], %s303
        %s305 = sand.u32 %s208, 1
        %s306 = smul.addr %s305, 8
        %s307 = scalar_lea.vmem [#allocation2], %s306
        %p308 = scmp.lt.s32.totalorder %s22, 1
        %s309 = scalar_select %p308, %s22, 1
        %s310 = smul.addr %s309, 8
        %s311 = scalar_lea.vmem %s0, %s310
        %p312 = scmp.lt.s32.totalorder %s22, 1
        %s313 = scalar_select %p312, %s22, 1
        %s314 = scalar_lea.vmem %s1, %s313
        %v315 = vld [vmem:[%s311] sm:$0xff]
        %v316 = vld [vmem:[%s314] sm:$0x1]
        %vm317 = vcmp.eq.f32.partialorder %v316, 0.0
        %v318 = vsel %vm317, -inf, 0.0
        %v319 = vld [vmem:[%s2] sm:$0x1]
        %v320 = vld [vmem:[%s2 + $0x1] sm:$0x1]
        %v321 = vld [vmem:[%s2 + $0x2] sm:$0x1]
        %v322 = vld [vmem:[%s2 + $0x3] sm:$0x1]
        %v323 = vld [vmem:[%s2 + $0x4] sm:$0x1]
        %v324 = vld [vmem:[%s2 + $0x5] sm:$0x1]
        %vm325 = vcmask 261120
        %v326 = vsel %vm325, %v315, 0.0
        %327 = vadd.xlane.f32.xlu0 %v326
        %v328 = vpop.xlane.xlu0 %327
        %v329 = vrcp.pop 32.0
        %v330 = vmul.f32 %v328, %v329
        %v331 = vsub.f32 %v315, %v330
        %v332 = vmul.f32 %v331, %v331
        %v333 = vsel %vm325, %v332, 0.0
        %334 = vadd.xlane.f32.xlu0 %v333
        %v335 = vpop.xlane.xlu0 %334
        %v336 = vmul.f32 %v335, %v329
        %v337 = vadd.f32 %v336, 1e-05
        %v338 = vrsqrt.pop %v337
        %v339 = vmul.f32 %v331, %v338
        %v340 = vlaneseq
        %v341 = vshrl.u32 %v340, 7
        %v342 = vsub.s32 0, %v341
        %v343 = vrot.slane %v319, %v342
        %v344 = vmul.f32 %v339, %v343
        %v345 = vlaneseq
        %v346 = vshrl.u32 %v345, 7
        %v347 = vsub.s32 0, %v346
        %v348 = vrot.slane %v320, %v347
        %v349 = vadd.f32 %v344, %v348
        %v350 = vld [vmem:[%s3] sm:$0xff]
        %v351 = vld [vmem:[%s3 + $0x8] sm:$0xff]
        %v352 = vld [vmem:[%s3 + $0x10] sm:$0xff]
        %v353 = vld [vmem:[%s3 + $0x18] sm:$0xff]
        %v355 = vsel %vm325, %v349, 0
        %357 = vmatprep.subr.mxu0 0.0
        %358 = vmatpush1.msra.mxu0 0.0
        %359 = vmatprep.subr.mxu0 0.0
        %360 = vmatpush1.msra.mxu0 0.0
        %361 = vmatprep.subr.mxu0 0.0
        %362 = vmatpush1.msra.mxu0 0.0
        %363 = vmatprep.subr.mxu0 0.0
        %364 = vmatpush1.msra.mxu0 0.0
        %365 = vmatprep.subr.mxu0 0.0
        %366 = vmatpush1.msra.mxu0 0.0
        %367 = vmatprep.subr.mxu0 0.0
        %368 = vmatpush1.msra.mxu0 0.0
        %369 = vmatprep.subr.mxu0 0.0
        %370 = vmatpush1.msra.mxu0 0.0
        %371 = vmatprep.subr.mxu0 0.0
        %372 = vmatpush1.msra.mxu0 0.0
        %373 = vmatprep.subr.mxu0 0.0
        %374 = vmatpush1.msra.mxu0 0.0
        %375 = vmatprep.subr.mxu0 0.0
        %376 = vmatpush1.msra.mxu0 0.0
        %377 = vmatprep.subr.mxu0 0.0
        %378 = vmatpush1.msra.mxu0 0.0
        %379 = vmatprep.subr.mxu0 0.0
        %380 = vmatpush1.msra.mxu0 0.0
        %381 = vmatprep.subr.mxu0 0.0
        %382 = vmatpush1.msra.mxu0 %v353
        %383 = vmatprep.subr.mxu0 0.0
        %384 = vmatpush1.msra.mxu0 %v352
        %385 = vmatprep.subr.mxu0 0.0
        %386 = vmatpush1.msra.mxu0 %v351
        %387 = vmatprep.subr.mxu0 0.0
        %388 = vmatpush1.msra.mxu0 %v350
        %389 = vmatprep.subr.mxu0 0.0
        %390 = vmatpush2.msra.mxu0 0.0
        %391 = vmatprep.subr.mxu0 0.0
        %392 = vmatpush2.msra.mxu0 0.0
        %393 = vmatprep.subr.mxu0 0.0
        %394 = vmatpush2.msra.mxu0 0.0
        %395 = vmatprep.subr.mxu0 0.0
        %396 = vmatpush2.msra.mxu0 0.0
        %397 = vmatprep.subr.mxu0 0.0
        %398 = vmatpush2.msra.mxu0 0.0
        %399 = vmatprep.subr.mxu0 0.0
        %400 = vmatpush2.msra.mxu0 0.0
        %401 = vmatprep.subr.mxu0 0.0
        %402 = vmatpush2.msra.mxu0 0.0
        %403 = vmatprep.subr.mxu0 0.0
        %404 = vmatpush2.msra.mxu0 0.0
        %405 = vmatprep.subr.mxu0 0.0
        %406 = vmatpush2.msra.mxu0 0.0
        %407 = vmatprep.subr.mxu0 0.0
        %408 = vmatpush2.msra.mxu0 0.0
        %409 = vmatprep.subr.mxu0 0.0
        %410 = vmatpush2.msra.mxu0 0.0
        %411 = vmatprep.subr.mxu0 0.0
        %412 = vmatpush2.msra.mxu0 0.0
        %413 = vmatprep.subr.mxu0 0.0
        %414 = vmatpush2.msra.mxu0 0.0
        %415 = vmatprep.subr.mxu0 0.0
        %416 = vmatpush2.msra.mxu0 0.0
        %417 = vmatprep.subr.mxu0 0.0
        %418 = vmatpush2.msra.mxu0 0.0
        %419 = vmatprep.subr.mxu0 0.0
        %420 = vmatpush2.msra.mxu0 0.0
        %421 = vmatprep.mubr.f32.mxu0 0.0
        %422 = vmatmul.mubr.f32.gmra.mxu0 %v355
        %v423 = vpop.f32.mrf.mxu0
        %v424 = vadd.f32 0.0, %v423
        %v425 = vpop.f32.mrf.mxu0
        %426 = vdwg.mxu0
        %v428 = vlaneseq
        %v429 = vshrl.u32 %v428, 7
        %v430 = vsub.s32 0, %v429
        %v431 = vrot.slane %v318, %v430
        %434 = vrot.lane.b32.xlu0 %v424, 96
        %v435 = vpop.permute.xlu0 %434
        %vm436 = vcmask 64512
        %v437 = vsel %vm436, %v424, 0
        %v439 = vsel %vm436, %v435, 0
        %441 = vmatprep.subr.mxu0 0.0
        %442 = vmatpush1.xpose.msra.mxu0 0.0
        %443 = vmatprep.subr.mxu0 0.0
        %444 = vmatpush1.xpose.msra.mxu0 0.0
        %445 = vmatprep.subr.mxu0 0.0
        %446 = vmatpush1.xpose.msra.mxu0 0.0
        %447 = vmatprep.subr.mxu0 0.0
        %448 = vmatpush1.xpose.msra.mxu0 0.0
        %449 = vmatprep.subr.mxu0 0.0
        %450 = vmatpush1.xpose.msra.mxu0 0.0
        %451 = vmatprep.subr.mxu0 0.0
        %452 = vmatpush1.xpose.msra.mxu0 0.0
        %453 = vmatprep.subr.mxu0 0.0
        %454 = vmatpush1.xpose.msra.mxu0 0.0
        %455 = vmatprep.subr.mxu0 0.0
        %456 = vmatpush1.xpose.msra.mxu0 0.0
        %457 = vmatprep.subr.mxu0 0.0
        %458 = vmatpush1.xpose.msra.mxu0 0.0
        %459 = vmatprep.subr.mxu0 0.0
        %460 = vmatpush1.xpose.msra.mxu0 0.0
        %461 = vmatprep.subr.mxu0 0.0
        %462 = vmatpush1.xpose.msra.mxu0 0.0
        %463 = vmatprep.subr.mxu0 0.0
        %464 = vmatpush1.xpose.msra.mxu0 0.0
        %465 = vmatprep.subr.mxu0 0.0
        %466 = vmatpush1.xpose.msra.mxu0 0.0
        %467 = vmatprep.subr.mxu0 0.0
        %468 = vmatpush1.xpose.msra.mxu0 0.0
        %469 = vmatprep.subr.mxu0 0.0
        %470 = vmatpush1.xpose.msra.mxu0 0.0
        %471 = vmatprep.subr.mxu0 0.0
        %472 = vmatpush1.xpose.msra.mxu0 %v439
        %473 = vmatprep.subr.mxu0 0.0
        %474 = vmatpush2.xpose.msra.mxu0 0.0
        %475 = vmatprep.subr.mxu0 0.0
        %476 = vmatpush2.xpose.msra.mxu0 0.0
        %477 = vmatprep.subr.mxu0 0.0
        %478 = vmatpush2.xpose.msra.mxu0 0.0
        %479 = vmatprep.subr.mxu0 0.0
        %480 = vmatpush2.xpose.msra.mxu0 0.0
        %481 = vmatprep.subr.mxu0 0.0
        %482 = vmatpush2.xpose.msra.mxu0 0.0
        %483 = vmatprep.subr.mxu0 0.0
        %484 = vmatpush2.xpose.msra.mxu0 0.0
        %485 = vmatprep.subr.mxu0 0.0
        %486 = vmatpush2.xpose.msra.mxu0 0.0
        %487 = vmatprep.subr.mxu0 0.0
        %488 = vmatpush2.xpose.msra.mxu0 0.0
        %489 = vmatprep.subr.mxu0 0.0
        %490 = vmatpush2.xpose.msra.mxu0 0.0
        %491 = vmatprep.subr.mxu0 0.0
        %492 = vmatpush2.xpose.msra.mxu0 0.0
        %493 = vmatprep.subr.mxu0 0.0
        %494 = vmatpush2.xpose.msra.mxu0 0.0
        %495 = vmatprep.subr.mxu0 0.0
        %496 = vmatpush2.xpose.msra.mxu0 0.0
        %497 = vmatprep.subr.mxu0 0.0
        %498 = vmatpush2.xpose.msra.mxu0 0.0
        %499 = vmatprep.subr.mxu0 0.0
        %500 = vmatpush2.xpose.msra.mxu0 0.0
        %501 = vmatprep.subr.mxu0 0.0
        %502 = vmatpush2.xpose.msra.mxu0 0.0
        %503 = vmatprep.subr.mxu0 0.0
        %504 = vmatpush2.xpose.msra.mxu0 0.0
        %505 = vmatprep.mubr.f32.mxu0 0.0
        %506 = vmatmul.mubr.f32.gmra.mxu0 %v437
        %v507 = vpop.f32.mrf.mxu0
        %v508 = vadd.f32 %v431, %v507
        %v509 = vpop.f32.mrf.mxu0
        %510 = vdwg.mxu0
        %v511 = vsel %vm436, %v508, -inf
        %512 = vmax.xlane.f32.xlu0 %v511
        %v513 = vpop.xlane.xlu0 %512
        %v514 = vsub.f32 %v508, %v513
        %v515 = vmul.f32 %v514, 1.442695
        %v516 = vpow.pop %v515
        %v517 = vsel %vm436, %v516, 0.0
        %518 = vadd.xlane.f32.xlu0 %v517
        %v519 = vpop.xlane.xlu0 %518
        %v520 = vrcp.pop %v519
        %v521 = vmul.f32 1.0, %v520
        %522 = vrot.lane.b32.xlu0 %v424, 64
        %v523 = vpop.permute.xlu0 %522
        %v526 = vsel %vm436, %v516, 0
        %528 = vmatprep.subr.mxu0 0.0
        %529 = vmatpush1.msra.mxu0 0.0
        %530 = vmatprep.subr.mxu0 0.0
        %531 = vmatpush1.msra.mxu0 0.0
        %532 = vmatprep.subr.mxu0 0.0
        %533 = vmatpush1.msra.mxu0 0.0
        %534 = vmatprep.subr.mxu0 0.0
        %535 = vmatpush1.msra.mxu0 0.0
        %536 = vmatprep.subr.mxu0 0.0
        %537 = vmatpush1.msra.mxu0 0.0
        %538 = vmatprep.subr.mxu0 0.0
        %539 = vmatpush1.msra.mxu0 0.0
        %540 = vmatprep.subr.mxu0 0.0
        %541 = vmatpush1.msra.mxu0 0.0
        %542 = vmatprep.subr.mxu0 0.0
        %543 = vmatpush1.msra.mxu0 0.0
        %544 = vmatprep.subr.mxu0 0.0
        %545 = vmatpush1.msra.mxu0 0.0
        %546 = vmatprep.subr.mxu0 0.0
        %547 = vmatpush1.msra.mxu0 0.0
        %548 = vmatprep.subr.mxu0 0.0
        %549 = vmatpush1.msra.mxu0 0.0
        %550 = vmatprep.subr.mxu0 0.0
        %551 = vmatpush1.msra.mxu0 0.0
        %552 = vmatprep.subr.mxu0 0.0
        %553 = vmatpush1.msra.mxu0 0.0
        %554 = vmatprep.subr.mxu0 0.0
        %555 = vmatpush1.msra.mxu0 0.0
        %556 = vmatprep.subr.mxu0 0.0
        %557 = vmatpush1.msra.mxu0 0.0
        %558 = vmatprep.subr.mxu0 0.0
        %559 = vmatpush1.msra.mxu0 %v523
        %560 = vmatprep.subr.mxu0 0.0
        %561 = vmatpush2.msra.mxu0 0.0
        %562 = vmatprep.subr.mxu0 0.0
        %563 = vmatpush2.msra.mxu0 0.0
        %564 = vmatprep.subr.mxu0 0.0
        %565 = vmatpush2.msra.mxu0 0.0
        %566 = vmatprep.subr.mxu0 0.0
        %567 = vmatpush2.msra.mxu0 0.0
        %568 = vmatprep.subr.mxu0 0.0
        %569 = vmatpush2.msra.mxu0 0.0
        %570 = vmatprep.subr.mxu0 0.0
        %571 = vmatpush2.msra.mxu0 0.0
        %572 = vmatprep.subr.mxu0 0.0
        %573 = vmatpush2.msra.mxu0 0.0
        %574 = vmatprep.subr.mxu0 0.0
        %575 = vmatpush2.msra.mxu0 0.0
        %576 = vmatprep.subr.mxu0 0.0
        %577 = vmatpush2.msra.mxu0 0.0
        %578 = vmatprep.subr.mxu0 0.0
        %579 = vmatpush2.msra.mxu0 0.0
        %580 = vmatprep.subr.mxu0 0.0
        %581 = vmatpush2.msra.mxu0 0.0
        %582 = vmatprep.subr.mxu0 0.0
        %583 = vmatpush2.msra.mxu0 0.0
        %584 = vmatprep.subr.mxu0 0.0
        %585 = vmatpush2.msra.mxu0 0.0
        %586 = vmatprep.subr.mxu0 0.0
        %587 = vmatpush2.msra.mxu0 0.0
        %588 = vmatprep.subr.mxu0 0.0
        %589 = vmatpush2.msra.mxu0 0.0
        %590 = vmatprep.subr.mxu0 0.0
        %591 = vmatpush2.msra.mxu0 0.0
        %592 = vmatprep.mubr.f32.mxu0 0.0
        %593 = vmatmul.mubr.f32.gmra.mxu0 %v526
        %v594 = vpop.f32.mrf.mxu0
        %v595 = vadd.f32 0.0, %v594
        %v596 = vpop.f32.mrf.mxu0
        %597 = vdwg.mxu0
        %v598 = vmul.f32 %v595, %v521
        %v599 = vld [vmem:[%s4] sm:$0xff]
        %600 = vrot.lane.b32.xlu0 %v424, 120
        %v601 = vpop.permute.xlu0 %600
        %602 = vrot.lane.b32.xlu0 %v424, 88
        %v603 = vpop.permute.xlu0 %602
        %v604 = vsel %vm436, %v601, 0
        %v606 = vsel %vm436, %v603, 0
        %608 = vmatprep.subr.mxu0 0.0
        %609 = vmatpush1.xpose.msra.mxu0 0.0
        %610 = vmatprep.subr.mxu0 0.0
        %611 = vmatpush1.xpose.msra.mxu0 0.0
        %612 = vmatprep.subr.mxu0 0.0
        %613 = vmatpush1.xpose.msra.mxu0 0.0
        %614 = vmatprep.subr.mxu0 0.0
        %615 = vmatpush1.xpose.msra.mxu0 0.0
        %616 = vmatprep.subr.mxu0 0.0
        %617 = vmatpush1.xpose.msra.mxu0 0.0
        %618 = vmatprep.subr.mxu0 0.0
        %619 = vmatpush1.xpose.msra.mxu0 0.0
        %620 = vmatprep.subr.mxu0 0.0
        %621 = vmatpush1.xpose.msra.mxu0 0.0
        %622 = vmatprep.subr.mxu0 0.0
        %623 = vmatpush1.xpose.msra.mxu0 0.0
        %624 = vmatprep.subr.mxu0 0.0
        %625 = vmatpush1.xpose.msra.mxu0 0.0
        %626 = vmatprep.subr.mxu0 0.0
        %627 = vmatpush1.xpose.msra.mxu0 0.0
        %628 = vmatprep.subr.mxu0 0.0
        %629 = vmatpush1.xpose.msra.mxu0 0.0
        %630 = vmatprep.subr.mxu0 0.0
        %631 = vmatpush1.xpose.msra.mxu0 0.0
        %632 = vmatprep.subr.mxu0 0.0
        %633 = vmatpush1.xpose.msra.mxu0 0.0
        %634 = vmatprep.subr.mxu0 0.0
        %635 = vmatpush1.xpose.msra.mxu0 0.0
        %636 = vmatprep.subr.mxu0 0.0
        %637 = vmatpush1.xpose.msra.mxu0 0.0
        %638 = vmatprep.subr.mxu0 0.0
        %639 = vmatpush1.xpose.msra.mxu0 %v606
        %640 = vmatprep.subr.mxu0 0.0
        %641 = vmatpush2.xpose.msra.mxu0 0.0
        %642 = vmatprep.subr.mxu0 0.0
        %643 = vmatpush2.xpose.msra.mxu0 0.0
        %644 = vmatprep.subr.mxu0 0.0
        %645 = vmatpush2.xpose.msra.mxu0 0.0
        %646 = vmatprep.subr.mxu0 0.0
        %647 = vmatpush2.xpose.msra.mxu0 0.0
        %648 = vmatprep.subr.mxu0 0.0
        %649 = vmatpush2.xpose.msra.mxu0 0.0
        %650 = vmatprep.subr.mxu0 0.0
        %651 = vmatpush2.xpose.msra.mxu0 0.0
        %652 = vmatprep.subr.mxu0 0.0
        %653 = vmatpush2.xpose.msra.mxu0 0.0
        %654 = vmatprep.subr.mxu0 0.0
        %655 = vmatpush2.xpose.msra.mxu0 0.0
        %656 = vmatprep.subr.mxu0 0.0
        %657 = vmatpush2.xpose.msra.mxu0 0.0
        %658 = vmatprep.subr.mxu0 0.0
        %659 = vmatpush2.xpose.msra.mxu0 0.0
        %660 = vmatprep.subr.mxu0 0.0
        %661 = vmatpush2.xpose.msra.mxu0 0.0
        %662 = vmatprep.subr.mxu0 0.0
        %663 = vmatpush2.xpose.msra.mxu0 0.0
        %664 = vmatprep.subr.mxu0 0.0
        %665 = vmatpush2.xpose.msra.mxu0 0.0
        %666 = vmatprep.subr.mxu0 0.0
        %667 = vmatpush2.xpose.msra.mxu0 0.0
        %668 = vmatprep.subr.mxu0 0.0
        %669 = vmatpush2.xpose.msra.mxu0 0.0
        %670 = vmatprep.subr.mxu0 0.0
        %671 = vmatpush2.xpose.msra.mxu0 0.0
        %672 = vmatprep.mubr.f32.mxu0 0.0
        %673 = vmatmul.mubr.f32.gmra.mxu0 %v604
        %v674 = vpop.f32.mrf.mxu0
        %v675 = vadd.f32 %v431, %v674
        %v676 = vpop.f32.mrf.mxu0
        %677 = vdwg.mxu0
        %v678 = vsel %vm436, %v675, -inf
        %679 = vmax.xlane.f32.xlu0 %v678
        %v680 = vpop.xlane.xlu0 %679
        %v681 = vsub.f32 %v675, %v680
        %v682 = vmul.f32 %v681, 1.442695
        %v683 = vpow.pop %v682
        %v684 = vsel %vm436, %v683, 0.0
        %685 = vadd.xlane.f32.xlu0 %v684
        %v686 = vpop.xlane.xlu0 %685
        %v687 = vrcp.pop %v686
        %v688 = vmul.f32 1.0, %v687
        %689 = vrot.lane.b32.xlu0 %v424, 56
        %v690 = vpop.permute.xlu0 %689
        %v693 = vsel %vm436, %v683, 0
        %695 = vmatprep.subr.mxu0 0.0
        %696 = vmatpush1.msra.mxu0 0.0
        %697 = vmatprep.subr.mxu0 0.0
        %698 = vmatpush1.msra.mxu0 0.0
        %699 = vmatprep.subr.mxu0 0.0
        %700 = vmatpush1.msra.mxu0 0.0
        %701 = vmatprep.subr.mxu0 0.0
        %702 = vmatpush1.msra.mxu0 0.0
        %703 = vmatprep.subr.mxu0 0.0
        %704 = vmatpush1.msra.mxu0 0.0
        %705 = vmatprep.subr.mxu0 0.0
        %706 = vmatpush1.msra.mxu0 0.0
        %707 = vmatprep.subr.mxu0 0.0
        %708 = vmatpush1.msra.mxu0 0.0
        %709 = vmatprep.subr.mxu0 0.0
        %710 = vmatpush1.msra.mxu0 0.0
        %711 = vmatprep.subr.mxu0 0.0
        %712 = vmatpush1.msra.mxu0 0.0
        %713 = vmatprep.subr.mxu0 0.0
        %714 = vmatpush1.msra.mxu0 0.0
        %715 = vmatprep.subr.mxu0 0.0
        %716 = vmatpush1.msra.mxu0 0.0
        %717 = vmatprep.subr.mxu0 0.0
        %718 = vmatpush1.msra.mxu0 0.0
        %719 = vmatprep.subr.mxu0 0.0
        %720 = vmatpush1.msra.mxu0 0.0
        %721 = vmatprep.subr.mxu0 0.0
        %722 = vmatpush1.msra.mxu0 0.0
        %723 = vmatprep.subr.mxu0 0.0
        %724 = vmatpush1.msra.mxu0 0.0
        %725 = vmatprep.subr.mxu0 0.0
        %726 = vmatpush1.msra.mxu0 %v690
        %727 = vmatprep.subr.mxu0 0.0
        %728 = vmatpush2.msra.mxu0 0.0
        %729 = vmatprep.subr.mxu0 0.0
        %730 = vmatpush2.msra.mxu0 0.0
        %731 = vmatprep.subr.mxu0 0.0
        %732 = vmatpush2.msra.mxu0 0.0
        %733 = vmatprep.subr.mxu0 0.0
        %734 = vmatpush2.msra.mxu0 0.0
        %735 = vmatprep.subr.mxu0 0.0
        %736 = vmatpush2.msra.mxu0 0.0
        %737 = vmatprep.subr.mxu0 0.0
        %738 = vmatpush2.msra.mxu0 0.0
        %739 = vmatprep.subr.mxu0 0.0
        %740 = vmatpush2.msra.mxu0 0.0
        %741 = vmatprep.subr.mxu0 0.0
        %742 = vmatpush2.msra.mxu0 0.0
        %743 = vmatprep.subr.mxu0 0.0
        %744 = vmatpush2.msra.mxu0 0.0
        %745 = vmatprep.subr.mxu0 0.0
        %746 = vmatpush2.msra.mxu0 0.0
        %747 = vmatprep.subr.mxu0 0.0
        %748 = vmatpush2.msra.mxu0 0.0
        %749 = vmatprep.subr.mxu0 0.0
        %750 = vmatpush2.msra.mxu0 0.0
        %751 = vmatprep.subr.mxu0 0.0
        %752 = vmatpush2.msra.mxu0 0.0
        %753 = vmatprep.subr.mxu0 0.0
        %754 = vmatpush2.msra.mxu0 0.0
        %755 = vmatprep.subr.mxu0 0.0
        %756 = vmatpush2.msra.mxu0 0.0
        %757 = vmatprep.subr.mxu0 0.0
        %758 = vmatpush2.msra.mxu0 0.0
        %759 = vmatprep.mubr.f32.mxu0 0.0
        %760 = vmatmul.mubr.f32.gmra.mxu0 %v693
        %v761 = vpop.f32.mrf.mxu0
        %v762 = vadd.f32 0.0, %v761
        %v763 = vpop.f32.mrf.mxu0
        %764 = vdwg.mxu0
        %v765 = vmul.f32 %v762, %v688
        %v766 = vld [vmem:[%s4 + $0x8] sm:$0xff]
        %v768 = vsel %vm436, %v765, 0
        %770 = vmatprep.subr.mxu0 0.0
        %771 = vmatpush1.msra.mxu0 0.0
        %772 = vmatprep.subr.mxu0 0.0
        %773 = vmatpush1.msra.mxu0 0.0
        %774 = vmatprep.subr.mxu0 0.0
        %775 = vmatpush1.msra.mxu0 0.0
        %776 = vmatprep.subr.mxu0 0.0
        %777 = vmatpush1.msra.mxu0 0.0
        %778 = vmatprep.subr.mxu0 0.0
        %779 = vmatpush1.msra.mxu0 0.0
        %780 = vmatprep.subr.mxu0 0.0
        %781 = vmatpush1.msra.mxu0 0.0
        %782 = vmatprep.subr.mxu0 0.0
        %783 = vmatpush1.msra.mxu0 0.0
        %784 = vmatprep.subr.mxu0 0.0
        %785 = vmatpush1.msra.mxu0 0.0
        %786 = vmatprep.subr.mxu0 0.0
        %787 = vmatpush1.msra.mxu0 0.0
        %788 = vmatprep.subr.mxu0 0.0
        %789 = vmatpush1.msra.mxu0 0.0
        %790 = vmatprep.subr.mxu0 0.0
        %791 = vmatpush1.msra.mxu0 0.0
        %792 = vmatprep.subr.mxu0 0.0
        %793 = vmatpush1.msra.mxu0 0.0
        %794 = vmatprep.subr.mxu0 0.0
        %795 = vmatpush1.msra.mxu0 0.0
        %796 = vmatprep.subr.mxu0 0.0
        %797 = vmatpush1.msra.mxu0 0.0
        %798 = vmatprep.subr.mxu0 0.0
        %799 = vmatpush1.msra.mxu0 0.0
        %800 = vmatprep.subr.mxu0 0.0
        %801 = vmatpush1.msra.mxu0 %v766
        %802 = vmatprep.subr.mxu0 0.0
        %803 = vmatpush2.msra.mxu0 0.0
        %804 = vmatprep.subr.mxu0 0.0
        %805 = vmatpush2.msra.mxu0 0.0
        %806 = vmatprep.subr.mxu0 0.0
        %807 = vmatpush2.msra.mxu0 0.0
        %808 = vmatprep.subr.mxu0 0.0
        %809 = vmatpush2.msra.mxu0 0.0
        %810 = vmatprep.subr.mxu0 0.0
        %811 = vmatpush2.msra.mxu0 0.0
        %812 = vmatprep.subr.mxu0 0.0
        %813 = vmatpush2.msra.mxu0 0.0
        %814 = vmatprep.subr.mxu0 0.0
        %815 = vmatpush2.msra.mxu0 0.0
        %816 = vmatprep.subr.mxu0 0.0
        %817 = vmatpush2.msra.mxu0 0.0
        %818 = vmatprep.subr.mxu0 0.0
        %819 = vmatpush2.msra.mxu0 0.0
        %820 = vmatprep.subr.mxu0 0.0
        %821 = vmatpush2.msra.mxu0 0.0
        %822 = vmatprep.subr.mxu0 0.0
        %823 = vmatpush2.msra.mxu0 0.0
        %824 = vmatprep.subr.mxu0 0.0
        %825 = vmatpush2.msra.mxu0 0.0
        %826 = vmatprep.subr.mxu0 0.0
        %827 = vmatpush2.msra.mxu0 0.0
        %828 = vmatprep.subr.mxu0 0.0
        %829 = vmatpush2.msra.mxu0 0.0
        %830 = vmatprep.subr.mxu0 0.0
        %831 = vmatpush2.msra.mxu0 0.0
        %832 = vmatprep.subr.mxu0 0.0
        %833 = vmatpush2.msra.mxu0 0.0
        %834 = vmatprep.mubr.f32.mxu0 0.0
        %835 = vmatmul.mubr.f32.gmra.mxu0 %v768
        %v836 = vpop.f32.mrf.mxu0
        %v837 = vadd.f32 0.0, %v836
        %v838 = vpop.f32.mrf.mxu0
        %839 = vdwg.mxu0
        %v841 = vsel %vm436, %v598, 0
        %843 = vmatprep.subr.mxu0 0.0
        %844 = vmatpush1.msra.mxu0 0.0
        %845 = vmatprep.subr.mxu0 0.0
        %846 = vmatpush1.msra.mxu0 0.0
        %847 = vmatprep.subr.mxu0 0.0
        %848 = vmatpush1.msra.mxu0 0.0
        %849 = vmatprep.subr.mxu0 0.0
        %850 = vmatpush1.msra.mxu0 0.0
        %851 = vmatprep.subr.mxu0 0.0
        %852 = vmatpush1.msra.mxu0 0.0
        %853 = vmatprep.subr.mxu0 0.0
        %854 = vmatpush1.msra.mxu0 0.0
        %855 = vmatprep.subr.mxu0 0.0
        %856 = vmatpush1.msra.mxu0 0.0
        %857 = vmatprep.subr.mxu0 0.0
        %858 = vmatpush1.msra.mxu0 0.0
        %859 = vmatprep.subr.mxu0 0.0
        %860 = vmatpush1.msra.mxu0 0.0
        %861 = vmatprep.subr.mxu0 0.0
        %862 = vmatpush1.msra.mxu0 0.0
        %863 = vmatprep.subr.mxu0 0.0
        %864 = vmatpush1.msra.mxu0 0.0
        %865 = vmatprep.subr.mxu0 0.0
        %866 = vmatpush1.msra.mxu0 0.0
        %867 = vmatprep.subr.mxu0 0.0
        %868 = vmatpush1.msra.mxu0 0.0
        %869 = vmatprep.subr.mxu0 0.0
        %870 = vmatpush1.msra.mxu0 0.0
        %871 = vmatprep.subr.mxu0 0.0
        %872 = vmatpush1.msra.mxu0 0.0
        %873 = vmatprep.subr.mxu0 0.0
        %874 = vmatpush1.msra.mxu0 %v599
        %875 = vmatprep.subr.mxu0 0.0
        %876 = vmatpush2.msra.mxu0 0.0
        %877 = vmatprep.subr.mxu0 0.0
        %878 = vmatpush2.msra.mxu0 0.0
        %879 = vmatprep.subr.mxu0 0.0
        %880 = vmatpush2.msra.mxu0 0.0
        %881 = vmatprep.subr.mxu0 0.0
        %882 = vmatpush2.msra.mxu0 0.0
        %883 = vmatprep.subr.mxu0 0.0
        %884 = vmatpush2.msra.mxu0 0.0
        %885 = vmatprep.subr.mxu0 0.0
        %886 = vmatpush2.msra.mxu0 0.0
        %887 = vmatprep.subr.mxu0 0.0
        %888 = vmatpush2.msra.mxu0 0.0
        %889 = vmatprep.subr.mxu0 0.0
        %890 = vmatpush2.msra.mxu0 0.0
        %891 = vmatprep.subr.mxu0 0.0
        %892 = vmatpush2.msra.mxu0 0.0
        %893 = vmatprep.subr.mxu0 0.0
        %894 = vmatpush2.msra.mxu0 0.0
        %895 = vmatprep.subr.mxu0 0.0
        %896 = vmatpush2.msra.mxu0 0.0
        %897 = vmatprep.subr.mxu0 0.0
        %898 = vmatpush2.msra.mxu0 0.0
        %899 = vmatprep.subr.mxu0 0.0
        %900 = vmatpush2.msra.mxu0 0.0
        %901 = vmatprep.subr.mxu0 0.0
        %902 = vmatpush2.msra.mxu0 0.0
        %903 = vmatprep.subr.mxu0 0.0
        %904 = vmatpush2.msra.mxu0 0.0
        %905 = vmatprep.subr.mxu0 0.0
        %906 = vmatpush2.msra.mxu0 0.0
        %907 = vmatprep.mubr.f32.mxu0 0.0
        %908 = vmatmul.mubr.f32.gmra.mxu0 %v841
        %v909 = vpop.f32.mrf.mxu0
        %v910 = vadd.f32 %v837, %v909
        %v911 = vpop.f32.mrf.mxu0
        %912 = vdwg.mxu0
        %913 = vrot.lane.b32.xlu0 %v424, 112
        %v914 = vpop.permute.xlu0 %913
        %915 = vrot.lane.b32.xlu0 %v424, 80
        %v916 = vpop.permute.xlu0 %915
        %v917 = vsel %vm436, %v914, 0
        %v919 = vsel %vm436, %v916, 0
        %921 = vmatprep.subr.mxu0 0.0
        %922 = vmatpush1.xpose.msra.mxu0 0.0
        %923 = vmatprep.subr.mxu0 0.0
        %924 = vmatpush1.xpose.msra.mxu0 0.0
        %925 = vmatprep.subr.mxu0 0.0
        %926 = vmatpush1.xpose.msra.mxu0 0.0
        %927 = vmatprep.subr.mxu0 0.0
        %928 = vmatpush1.xpose.msra.mxu0 0.0
        %929 = vmatprep.subr.mxu0 0.0
        %930 = vmatpush1.xpose.msra.mxu0 0.0
        %931 = vmatprep.subr.mxu0 0.0
        %932 = vmatpush1.xpose.msra.mxu0 0.0
        %933 = vmatprep.subr.mxu0 0.0
        %934 = vmatpush1.xpose.msra.mxu0 0.0
        %935 = vmatprep.subr.mxu0 0.0
        %936 = vmatpush1.xpose.msra.mxu0 0.0
        %937 = vmatprep.subr.mxu0 0.0
        %938 = vmatpush1.xpose.msra.mxu0 0.0
        %939 = vmatprep.subr.mxu0 0.0
        %940 = vmatpush1.xpose.msra.mxu0 0.0
        %941 = vmatprep.subr.mxu0 0.0
        %942 = vmatpush1.xpose.msra.mxu0 0.0
        %943 = vmatprep.subr.mxu0 0.0
        %944 = vmatpush1.xpose.msra.mxu0 0.0
        %945 = vmatprep.subr.mxu0 0.0
        %946 = vmatpush1.xpose.msra.mxu0 0.0
        %947 = vmatprep.subr.mxu0 0.0
        %948 = vmatpush1.xpose.msra.mxu0 0.0
        %949 = vmatprep.subr.mxu0 0.0
        %950 = vmatpush1.xpose.msra.mxu0 0.0
        %951 = vmatprep.subr.mxu0 0.0
        %952 = vmatpush1.xpose.msra.mxu0 %v919
        %953 = vmatprep.subr.mxu0 0.0
        %954 = vmatpush2.xpose.msra.mxu0 0.0
        %955 = vmatprep.subr.mxu0 0.0
        %956 = vmatpush2.xpose.msra.mxu0 0.0
        %957 = vmatprep.subr.mxu0 0.0
        %958 = vmatpush2.xpose.msra.mxu0 0.0
        %959 = vmatprep.subr.mxu0 0.0
        %960 = vmatpush2.xpose.msra.mxu0 0.0
        %961 = vmatprep.subr.mxu0 0.0
        %962 = vmatpush2.xpose.msra.mxu0 0.0
        %963 = vmatprep.subr.mxu0 0.0
        %964 = vmatpush2.xpose.msra.mxu0 0.0
        %965 = vmatprep.subr.mxu0 0.0
        %966 = vmatpush2.xpose.msra.mxu0 0.0
        %967 = vmatprep.subr.mxu0 0.0
        %968 = vmatpush2.xpose.msra.mxu0 0.0
        %969 = vmatprep.subr.mxu0 0.0
        %970 = vmatpush2.xpose.msra.mxu0 0.0
        %971 = vmatprep.subr.mxu0 0.0
        %972 = vmatpush2.xpose.msra.mxu0 0.0
        %973 = vmatprep.subr.mxu0 0.0
        %974 = vmatpush2.xpose.msra.mxu0 0.0
        %975 = vmatprep.subr.mxu0 0.0
        %976 = vmatpush2.xpose.msra.mxu0 0.0
        %977 = vmatprep.subr.mxu0 0.0
        %978 = vmatpush2.xpose.msra.mxu0 0.0
        %979 = vmatprep.subr.mxu0 0.0
        %980 = vmatpush2.xpose.msra.mxu0 0.0
        %981 = vmatprep.subr.mxu0 0.0
        %982 = vmatpush2.xpose.msra.mxu0 0.0
        %983 = vmatprep.subr.mxu0 0.0
        %984 = vmatpush2.xpose.msra.mxu0 0.0
        %985 = vmatprep.mubr.f32.mxu0 0.0
        %986 = vmatmul.mubr.f32.gmra.mxu0 %v917
        %v987 = vpop.f32.mrf.mxu0
        %v988 = vadd.f32 %v431, %v987
        %v989 = vpop.f32.mrf.mxu0
        %990 = vdwg.mxu0
        %v991 = vsel %vm436, %v988, -inf
        %992 = vmax.xlane.f32.xlu0 %v991
        %v993 = vpop.xlane.xlu0 %992
        %v994 = vsub.f32 %v988, %v993
        %v995 = vmul.f32 %v994, 1.442695
        %v996 = vpow.pop %v995
        %v997 = vsel %vm436, %v996, 0.0
        %998 = vadd.xlane.f32.xlu0 %v997
        %v999 = vpop.xlane.xlu0 %998
        %v1000 = vrcp.pop %v999
        %v1001 = vmul.f32 1.0, %v1000
        %1002 = vrot.lane.b32.xlu0 %v424, 48
        %v1003 = vpop.permute.xlu0 %1002
        %v1006 = vsel %vm436, %v996, 0
        %1008 = vmatprep.subr.mxu0 0.0
        %1009 = vmatpush1.msra.mxu0 0.0
        %1010 = vmatprep.subr.mxu0 0.0
        %1011 = vmatpush1.msra.mxu0 0.0
        %1012 = vmatprep.subr.mxu0 0.0
        %1013 = vmatpush1.msra.mxu0 0.0
        %1014 = vmatprep.subr.mxu0 0.0
        %1015 = vmatpush1.msra.mxu0 0.0
        %1016 = vmatprep.subr.mxu0 0.0
        %1017 = vmatpush1.msra.mxu0 0.0
        %1018 = vmatprep.subr.mxu0 0.0
        %1019 = vmatpush1.msra.mxu0 0.0
        %1020 = vmatprep.subr.mxu0 0.0
        %1021 = vmatpush1.msra.mxu0 0.0
        %1022 = vmatprep.subr.mxu0 0.0
        %1023 = vmatpush1.msra.mxu0 0.0
        %1024 = vmatprep.subr.mxu0 0.0
        %1025 = vmatpush1.msra.mxu0 0.0
        %1026 = vmatprep.subr.mxu0 0.0
        %1027 = vmatpush1.msra.mxu0 0.0
        %1028 = vmatprep.subr.mxu0 0.0
        %1029 = vmatpush1.msra.mxu0 0.0
        %1030 = vmatprep.subr.mxu0 0.0
        %1031 = vmatpush1.msra.mxu0 0.0
        %1032 = vmatprep.subr.mxu0 0.0
        %1033 = vmatpush1.msra.mxu0 0.0
        %1034 = vmatprep.subr.mxu0 0.0
        %1035 = vmatpush1.msra.mxu0 0.0
        %1036 = vmatprep.subr.mxu0 0.0
        %1037 = vmatpush1.msra.mxu0 0.0
        %1038 = vmatprep.subr.mxu0 0.0
        %1039 = vmatpush1.msra.mxu0 %v1003
        %1040 = vmatprep.subr.mxu0 0.0
        %1041 = vmatpush2.msra.mxu0 0.0
        %1042 = vmatprep.subr.mxu0 0.0
        %1043 = vmatpush2.msra.mxu0 0.0
        %1044 = vmatprep.subr.mxu0 0.0
        %1045 = vmatpush2.msra.mxu0 0.0
        %1046 = vmatprep.subr.mxu0 0.0
        %1047 = vmatpush2.msra.mxu0 0.0
        %1048 = vmatprep.subr.mxu0 0.0
        %1049 = vmatpush2.msra.mxu0 0.0
        %1050 = vmatprep.subr.mxu0 0.0
        %1051 = vmatpush2.msra.mxu0 0.0
        %1052 = vmatprep.subr.mxu0 0.0
        %1053 = vmatpush2.msra.mxu0 0.0
        %1054 = vmatprep.subr.mxu0 0.0
        %1055 = vmatpush2.msra.mxu0 0.0
        %1056 = vmatprep.subr.mxu0 0.0
        %1057 = vmatpush2.msra.mxu0 0.0
        %1058 = vmatprep.subr.mxu0 0.0
        %1059 = vmatpush2.msra.mxu0 0.0
        %1060 = vmatprep.subr.mxu0 0.0
        %1061 = vmatpush2.msra.mxu0 0.0
        %1062 = vmatprep.subr.mxu0 0.0
        %1063 = vmatpush2.msra.mxu0 0.0
        %1064 = vmatprep.subr.mxu0 0.0
        %1065 = vmatpush2.msra.mxu0 0.0
        %1066 = vmatprep.subr.mxu0 0.0
        %1067 = vmatpush2.msra.mxu0 0.0
        %1068 = vmatprep.subr.mxu0 0.0
        %1069 = vmatpush2.msra.mxu0 0.0
        %1070 = vmatprep.subr.mxu0 0.0
        %1071 = vmatpush2.msra.mxu0 0.0
        %1072 = vmatprep.mubr.f32.mxu0 0.0
        %1073 = vmatmul.mubr.f32.gmra.mxu0 %v1006
        %v1074 = vpop.f32.mrf.mxu0
        %v1075 = vadd.f32 0.0, %v1074
        %v1076 = vpop.f32.mrf.mxu0
        %1077 = vdwg.mxu0
        %v1078 = vmul.f32 %v1075, %v1001
        %v1079 = vld [vmem:[%s4 + $0x10] sm:$0xff]
        %v1081 = vsel %vm436, %v1078, 0
        %1083 = vmatprep.subr.mxu0 0.0
        %1084 = vmatpush1.msra.mxu0 0.0
        %1085 = vmatprep.subr.mxu0 0.0
        %1086 = vmatpush1.msra.mxu0 0.0
        %1087 = vmatprep.subr.mxu0 0.0
        %1088 = vmatpush1.msra.mxu0 0.0
        %1089 = vmatprep.subr.mxu0 0.0
        %1090 = vmatpush1.msra.mxu0 0.0
        %1091 = vmatprep.subr.mxu0 0.0
        %1092 = vmatpush1.msra.mxu0 0.0
        %1093 = vmatprep.subr.mxu0 0.0
        %1094 = vmatpush1.msra.mxu0 0.0
        %1095 = vmatprep.subr.mxu0 0.0
        %1096 = vmatpush1.msra.mxu0 0.0
        %1097 = vmatprep.subr.mxu0 0.0
        %1098 = vmatpush1.msra.mxu0 0.0
        %1099 = vmatprep.subr.mxu0 0.0
        %1100 = vmatpush1.msra.mxu0 0.0
        %1101 = vmatprep.subr.mxu0 0.0
        %1102 = vmatpush1.msra.mxu0 0.0
        %1103 = vmatprep.subr.mxu0 0.0
        %1104 = vmatpush1.msra.mxu0 0.0
        %1105 = vmatprep.subr.mxu0 0.0
        %1106 = vmatpush1.msra.mxu0 0.0
        %1107 = vmatprep.subr.mxu0 0.0
        %1108 = vmatpush1.msra.mxu0 0.0
        %1109 = vmatprep.subr.mxu0 0.0
        %1110 = vmatpush1.msra.mxu0 0.0
        %1111 = vmatprep.subr.mxu0 0.0
        %1112 = vmatpush1.msra.mxu0 0.0
        %1113 = vmatprep.subr.mxu0 0.0
        %1114 = vmatpush1.msra.mxu0 %v1079
        %1115 = vmatprep.subr.mxu0 0.0
        %1116 = vmatpush2.msra.mxu0 0.0
        %1117 = vmatprep.subr.mxu0 0.0
        %1118 = vmatpush2.msra.mxu0 0.0
        %1119 = vmatprep.subr.mxu0 0.0
        %1120 = vmatpush2.msra.mxu0 0.0
        %1121 = vmatprep.subr.mxu0 0.0
        %1122 = vmatpush2.msra.mxu0 0.0
        %1123 = vmatprep.subr.mxu0 0.0
        %1124 = vmatpush2.msra.mxu0 0.0
        %1125 = vmatprep.subr.mxu0 0.0
        %1126 = vmatpush2.msra.mxu0 0.0
        %1127 = vmatprep.subr.mxu0 0.0
        %1128 = vmatpush2.msra.mxu0 0.0
        %1129 = vmatprep.subr.mxu0 0.0
        %1130 = vmatpush2.msra.mxu0 0.0
        %1131 = vmatprep.subr.mxu0 0.0
        %1132 = vmatpush2.msra.mxu0 0.0
        %1133 = vmatprep.subr.mxu0 0.0
        %1134 = vmatpush2.msra.mxu0 0.0
        %1135 = vmatprep.subr.mxu0 0.0
        %1136 = vmatpush2.msra.mxu0 0.0
        %1137 = vmatprep.subr.mxu0 0.0
        %1138 = vmatpush2.msra.mxu0 0.0
        %1139 = vmatprep.subr.mxu0 0.0
        %1140 = vmatpush2.msra.mxu0 0.0
        %1141 = vmatprep.subr.mxu0 0.0
        %1142 = vmatpush2.msra.mxu0 0.0
        %1143 = vmatprep.subr.mxu0 0.0
        %1144 = vmatpush2.msra.mxu0 0.0
        %1145 = vmatprep.subr.mxu0 0.0
        %1146 = vmatpush2.msra.mxu0 0.0
        %1147 = vmatprep.mubr.f32.mxu0 0.0
        %1148 = vmatmul.mubr.f32.gmra.mxu0 %v1081
        %v1149 = vpop.f32.mrf.mxu0
        %v1150 = vadd.f32 0.0, %v1149
        %v1151 = vpop.f32.mrf.mxu0
        %1152 = vdwg.mxu0
        %v1153 = vadd.f32 %v910, %v1150
        %1154 = vrot.lane.b32.xlu0 %v424, 104
        %v1155 = vpop.permute.xlu0 %1154
        %1156 = vrot.lane.b32.xlu0 %v424, 72
        %v1157 = vpop.permute.xlu0 %1156
        %v1158 = vsel %vm436, %v1155, 0
        %v1160 = vsel %vm436, %v1157, 0
        %1162 = vmatprep.subr.mxu0 0.0
        %1163 = vmatpush1.xpose.msra.mxu0 0.0
        %1164 = vmatprep.subr.mxu0 0.0
        %1165 = vmatpush1.xpose.msra.mxu0 0.0
        %1166 = vmatprep.subr.mxu0 0.0
        %1167 = vmatpush1.xpose.msra.mxu0 0.0
        %1168 = vmatprep.subr.mxu0 0.0
        %1169 = vmatpush1.xpose.msra.mxu0 0.0
        %1170 = vmatprep.subr.mxu0 0.0
        %1171 = vmatpush1.xpose.msra.mxu0 0.0
        %1172 = vmatprep.subr.mxu0 0.0
        %1173 = vmatpush1.xpose.msra.mxu0 0.0
        %1174 = vmatprep.subr.mxu0 0.0
        %1175 = vmatpush1.xpose.msra.mxu0 0.0
        %1176 = vmatprep.subr.mxu0 0.0
        %1177 = vmatpush1.xpose.msra.mxu0 0.0
        %1178 = vmatprep.subr.mxu0 0.0
        %1179 = vmatpush1.xpose.msra.mxu0 0.0
        %1180 = vmatprep.subr.mxu0 0.0
        %1181 = vmatpush1.xpose.msra.mxu0 0.0
        %1182 = vmatprep.subr.mxu0 0.0
        %1183 = vmatpush1.xpose.msra.mxu0 0.0
        %1184 = vmatprep.subr.mxu0 0.0
        %1185 = vmatpush1.xpose.msra.mxu0 0.0
        %1186 = vmatprep.subr.mxu0 0.0
        %1187 = vmatpush1.xpose.msra.mxu0 0.0
        %1188 = vmatprep.subr.mxu0 0.0
        %1189 = vmatpush1.xpose.msra.mxu0 0.0
        %1190 = vmatprep.subr.mxu0 0.0
        %1191 = vmatpush1.xpose.msra.mxu0 0.0
        %1192 = vmatprep.subr.mxu0 0.0
        %1193 = vmatpush1.xpose.msra.mxu0 %v1160
        %1194 = vmatprep.subr.mxu0 0.0
        %1195 = vmatpush2.xpose.msra.mxu0 0.0
        %1196 = vmatprep.subr.mxu0 0.0
        %1197 = vmatpush2.xpose.msra.mxu0 0.0
        %1198 = vmatprep.subr.mxu0 0.0
        %1199 = vmatpush2.xpose.msra.mxu0 0.0
        %1200 = vmatprep.subr.mxu0 0.0
        %1201 = vmatpush2.xpose.msra.mxu0 0.0
        %1202 = vmatprep.subr.mxu0 0.0
        %1203 = vmatpush2.xpose.msra.mxu0 0.0
        %1204 = vmatprep.subr.mxu0 0.0
        %1205 = vmatpush2.xpose.msra.mxu0 0.0
        %1206 = vmatprep.subr.mxu0 0.0
        %1207 = vmatpush2.xpose.msra.mxu0 0.0
        %1208 = vmatprep.subr.mxu0 0.0
        %1209 = vmatpush2.xpose.msra.mxu0 0.0
        %1210 = vmatprep.subr.mxu0 0.0
        %1211 = vmatpush2.xpose.msra.mxu0 0.0
        %1212 = vmatprep.subr.mxu0 0.0
        %1213 = vmatpush2.xpose.msra.mxu0 0.0
        %1214 = vmatprep.subr.mxu0 0.0
        %1215 = vmatpush2.xpose.msra.mxu0 0.0
        %1216 = vmatprep.subr.mxu0 0.0
        %1217 = vmatpush2.xpose.msra.mxu0 0.0
        %1218 = vmatprep.subr.mxu0 0.0
        %1219 = vmatpush2.xpose.msra.mxu0 0.0
        %1220 = vmatprep.subr.mxu0 0.0
        %1221 = vmatpush2.xpose.msra.mxu0 0.0
        %1222 = vmatprep.subr.mxu0 0.0
        %1223 = vmatpush2.xpose.msra.mxu0 0.0
        %1224 = vmatprep.subr.mxu0 0.0
        %1225 = vmatpush2.xpose.msra.mxu0 0.0
        %1226 = vmatprep.mubr.f32.mxu0 0.0
        %1227 = vmatmul.mubr.f32.gmra.mxu0 %v1158
        %v1228 = vpop.f32.mrf.mxu0
        %v1229 = vadd.f32 %v431, %v1228
        %v1230 = vpop.f32.mrf.mxu0
        %1231 = vdwg.mxu0
        %v1232 = vsel %vm436, %v1229, -inf
        %1233 = vmax.xlane.f32.xlu0 %v1232
        %v1234 = vpop.xlane.xlu0 %1233
        %v1235 = vsub.f32 %v1229, %v1234
        %v1236 = vmul.f32 %v1235, 1.442695
        %v1237 = vpow.pop %v1236
        %v1238 = vsel %vm436, %v1237, 0.0
        %1239 = vadd.xlane.f32.xlu0 %v1238
        %v1240 = vpop.xlane.xlu0 %1239
        %v1241 = vrcp.pop %v1240
        %v1242 = vmul.f32 1.0, %v1241
        %1243 = vrot.lane.b32.xlu0 %v424, 40
        %v1244 = vpop.permute.xlu0 %1243
        %v1247 = vsel %vm436, %v1237, 0
        %1249 = vmatprep.subr.mxu0 0.0
        %1250 = vmatpush1.msra.mxu0 0.0
        %1251 = vmatprep.subr.mxu0 0.0
        %1252 = vmatpush1.msra.mxu0 0.0
        %1253 = vmatprep.subr.mxu0 0.0
        %1254 = vmatpush1.msra.mxu0 0.0
        %1255 = vmatprep.subr.mxu0 0.0
        %1256 = vmatpush1.msra.mxu0 0.0
        %1257 = vmatprep.subr.mxu0 0.0
        %1258 = vmatpush1.msra.mxu0 0.0
        %1259 = vmatprep.subr.mxu0 0.0
        %1260 = vmatpush1.msra.mxu0 0.0
        %1261 = vmatprep.subr.mxu0 0.0
        %1262 = vmatpush1.msra.mxu0 0.0
        %1263 = vmatprep.subr.mxu0 0.0
        %1264 = vmatpush1.msra.mxu0 0.0
        %1265 = vmatprep.subr.mxu0 0.0
        %1266 = vmatpush1.msra.mxu0 0.0
        %1267 = vmatprep.subr.mxu0 0.0
        %1268 = vmatpush1.msra.mxu0 0.0
        %1269 = vmatprep.subr.mxu0 0.0
        %1270 = vmatpush1.msra.mxu0 0.0
        %1271 = vmatprep.subr.mxu0 0.0
        %1272 = vmatpush1.msra.mxu0 0.0
        %1273 = vmatprep.subr.mxu0 0.0
        %1274 = vmatpush1.msra.mxu0 0.0
        %1275 = vmatprep.subr.mxu0 0.0
        %1276 = vmatpush1.msra.mxu0 0.0
        %1277 = vmatprep.subr.mxu0 0.0
        %1278 = vmatpush1.msra.mxu0 0.0
        %1279 = vmatprep.subr.mxu0 0.0
        %1280 = vmatpush1.msra.mxu0 %v1244
        %1281 = vmatprep.subr.mxu0 0.0
        %1282 = vmatpush2.msra.mxu0 0.0
        %1283 = vmatprep.subr.mxu0 0.0
        %1284 = vmatpush2.msra.mxu0 0.0
        %1285 = vmatprep.subr.mxu0 0.0
        %1286 = vmatpush2.msra.mxu0 0.0
        %1287 = vmatprep.subr.mxu0 0.0
        %1288 = vmatpush2.msra.mxu0 0.0
        %1289 = vmatprep.subr.mxu0 0.0
        %1290 = vmatpush2.msra.mxu0 0.0
        %1291 = vmatprep.subr.mxu0 0.0
        %1292 = vmatpush2.msra.mxu0 0.0
        %1293 = vmatprep.subr.mxu0 0.0
        %1294 = vmatpush2.msra.mxu0 0.0
        %1295 = vmatprep.subr.mxu0 0.0
        %1296 = vmatpush2.msra.mxu0 0.0
        %1297 = vmatprep.subr.mxu0 0.0
        %1298 = vmatpush2.msra.mxu0 0.0
        %1299 = vmatprep.subr.mxu0 0.0
        %1300 = vmatpush2.msra.mxu0 0.0
        %1301 = vmatprep.subr.mxu0 0.0
        %1302 = vmatpush2.msra.mxu0 0.0
        %1303 = vmatprep.subr.mxu0 0.0
        %1304 = vmatpush2.msra.mxu0 0.0
        %1305 = vmatprep.subr.mxu0 0.0
        %1306 = vmatpush2.msra.mxu0 0.0
        %1307 = vmatprep.subr.mxu0 0.0
        %1308 = vmatpush2.msra.mxu0 0.0
        %1309 = vmatprep.subr.mxu0 0.0
        %1310 = vmatpush2.msra.mxu0 0.0
        %1311 = vmatprep.subr.mxu0 0.0
        %1312 = vmatpush2.msra.mxu0 0.0
        %1313 = vmatprep.mubr.f32.mxu0 0.0
        %1314 = vmatmul.mubr.f32.gmra.mxu0 %v1247
        %v1315 = vpop.f32.mrf.mxu0
        %v1316 = vadd.f32 0.0, %v1315
        %v1317 = vpop.f32.mrf.mxu0
        %1318 = vdwg.mxu0
        %v1319 = vmul.f32 %v1316, %v1242
        %v1320 = vld [vmem:[%s4 + $0x18] sm:$0xff]
        %v1322 = vsel %vm436, %v1319, 0
        %1324 = vmatprep.subr.mxu0 0.0
        %1325 = vmatpush1.msra.mxu0 0.0
        %1326 = vmatprep.subr.mxu0 0.0
        %1327 = vmatpush1.msra.mxu0 0.0
        %1328 = vmatprep.subr.mxu0 0.0
        %1329 = vmatpush1.msra.mxu0 0.0
        %1330 = vmatprep.subr.mxu0 0.0
        %1331 = vmatpush1.msra.mxu0 0.0
        %1332 = vmatprep.subr.mxu0 0.0
        %1333 = vmatpush1.msra.mxu0 0.0
        %1334 = vmatprep.subr.mxu0 0.0
        %1335 = vmatpush1.msra.mxu0 0.0
        %1336 = vmatprep.subr.mxu0 0.0
        %1337 = vmatpush1.msra.mxu0 0.0
        %1338 = vmatprep.subr.mxu0 0.0
        %1339 = vmatpush1.msra.mxu0 0.0
        %1340 = vmatprep.subr.mxu0 0.0
        %1341 = vmatpush1.msra.mxu0 0.0
        %1342 = vmatprep.subr.mxu0 0.0
        %1343 = vmatpush1.msra.mxu0 0.0
        %1344 = vmatprep.subr.mxu0 0.0
        %1345 = vmatpush1.msra.mxu0 0.0
        %1346 = vmatprep.subr.mxu0 0.0
        %1347 = vmatpush1.msra.mxu0 0.0
        %1348 = vmatprep.subr.mxu0 0.0
        %1349 = vmatpush1.msra.mxu0 0.0
        %1350 = vmatprep.subr.mxu0 0.0
        %1351 = vmatpush1.msra.mxu0 0.0
        %1352 = vmatprep.subr.mxu0 0.0
        %1353 = vmatpush1.msra.mxu0 0.0
        %1354 = vmatprep.subr.mxu0 0.0
        %1355 = vmatpush1.msra.mxu0 %v1320
        %1356 = vmatprep.subr.mxu0 0.0
        %1357 = vmatpush2.msra.mxu0 0.0
        %1358 = vmatprep.subr.mxu0 0.0
        %1359 = vmatpush2.msra.mxu0 0.0
        %1360 = vmatprep.subr.mxu0 0.0
        %1361 = vmatpush2.msra.mxu0 0.0
        %1362 = vmatprep.subr.mxu0 0.0
        %1363 = vmatpush2.msra.mxu0 0.0
        %1364 = vmatprep.subr.mxu0 0.0
        %1365 = vmatpush2.msra.mxu0 0.0
        %1366 = vmatprep.subr.mxu0 0.0
        %1367 = vmatpush2.msra.mxu0 0.0
        %1368 = vmatprep.subr.mxu0 0.0
        %1369 = vmatpush2.msra.mxu0 0.0
        %1370 = vmatprep.subr.mxu0 0.0
        %1371 = vmatpush2.msra.mxu0 0.0
        %1372 = vmatprep.subr.mxu0 0.0
        %1373 = vmatpush2.msra.mxu0 0.0
        %1374 = vmatprep.subr.mxu0 0.0
        %1375 = vmatpush2.msra.mxu0 0.0
        %1376 = vmatprep.subr.mxu0 0.0
        %1377 = vmatpush2.msra.mxu0 0.0
        %1378 = vmatprep.subr.mxu0 0.0
        %1379 = vmatpush2.msra.mxu0 0.0
        %1380 = vmatprep.subr.mxu0 0.0
        %1381 = vmatpush2.msra.mxu0 0.0
        %1382 = vmatprep.subr.mxu0 0.0
        %1383 = vmatpush2.msra.mxu0 0.0
        %1384 = vmatprep.subr.mxu0 0.0
        %1385 = vmatpush2.msra.mxu0 0.0
        %1386 = vmatprep.subr.mxu0 0.0
        %1387 = vmatpush2.msra.mxu0 0.0
        %1388 = vmatprep.mubr.f32.mxu0 0.0
        %1389 = vmatmul.mubr.f32.gmra.mxu0 %v1322
        %v1390 = vpop.f32.mrf.mxu0
        %v1391 = vadd.f32 0.0, %v1390
        %v1392 = vpop.f32.mrf.mxu0
        %1393 = vdwg.mxu0
        %v1394 = vadd.f32 %v1153, %v1391
        %v1395 = vlaneseq
        %v1396 = vshrl.u32 %v1395, 7
        %v1397 = vsub.s32 0, %v1396
        %v1398 = vrot.slane %v323, %v1397
        %v1399 = vadd.f32 %v1394, %v1398
        %v1400 = vadd.f32 %v315, %v1399
        %v1401 = vsel %vm325, %v1400, 0.0
        %1402 = vadd.xlane.f32.xlu0 %v1401
        %v1403 = vpop.xlane.xlu0 %1402
        %v1404 = vmul.f32 %v1403, %v329
        %v1405 = vsub.f32 %v1400, %v1404
        %v1406 = vmul.f32 %v1405, %v1405
        %v1407 = vsel %vm325, %v1406, 0.0
        %1408 = vadd.xlane.f32.xlu0 %v1407
        %v1409 = vpop.xlane.xlu0 %1408
        %v1410 = vmul.f32 %v1409, %v329
        %v1411 = vadd.f32 %v1410, 1e-05
        %v1412 = vrsqrt.pop %v1411
        %v1413 = vmul.f32 %v1405, %v1412
        %v1414 = vlaneseq
        %v1415 = vshrl.u32 %v1414, 7
        %v1416 = vsub.s32 0, %v1415
        %v1417 = vrot.slane %v321, %v1416
        %v1418 = vmul.f32 %v1413, %v1417
        %v1419 = vlaneseq
        %v1420 = vshrl.u32 %v1419, 7
        %v1421 = vsub.s32 0, %v1420
        %v1422 = vrot.slane %v322, %v1421
        %v1423 = vadd.f32 %v1418, %v1422
        %v1424 = vld [vmem:[%s5] sm:$0xff]
        %v1425 = vld [vmem:[%s5 + $0x8] sm:$0xff]
        %v1426 = vld [vmem:[%s5 + $0x10] sm:$0xff]
        %v1427 = vld [vmem:[%s5 + $0x18] sm:$0xff]
        %v1428 = vld [vmem:[%s6] sm:$0x1]
        %v1430 = vlaneseq
        %v1431 = vshrl.u32 %v1430, 7
        %v1432 = vsub.s32 0, %v1431
        %v1433 = vrot.slane %v1428, %v1432
        %v1436 = vsel %vm325, %v1423, 0
        %1438 = vmatprep.subr.mxu0 0.0
        %1439 = vmatpush1.msra.mxu0 0.0
        %1440 = vmatprep.subr.mxu0 0.0
        %1441 = vmatpush1.msra.mxu0 0.0
        %1442 = vmatprep.subr.mxu0 0.0
        %1443 = vmatpush1.msra.mxu0 0.0
        %1444 = vmatprep.subr.mxu0 0.0
        %1445 = vmatpush1.msra.mxu0 0.0
        %1446 = vmatprep.subr.mxu0 0.0
        %1447 = vmatpush1.msra.mxu0 0.0
        %1448 = vmatprep.subr.mxu0 0.0
        %1449 = vmatpush1.msra.mxu0 0.0
        %1450 = vmatprep.subr.mxu0 0.0
        %1451 = vmatpush1.msra.mxu0 0.0
        %1452 = vmatprep.subr.mxu0 0.0
        %1453 = vmatpush1.msra.mxu0 0.0
        %1454 = vmatprep.subr.mxu0 0.0
        %1455 = vmatpush1.msra.mxu0 0.0
        %1456 = vmatprep.subr.mxu0 0.0
        %1457 = vmatpush1.msra.mxu0 0.0
        %1458 = vmatprep.subr.mxu0 0.0
        %1459 = vmatpush1.msra.mxu0 0.0
        %1460 = vmatprep.subr.mxu0 0.0
        %1461 = vmatpush1.msra.mxu0 0.0
        %1462 = vmatprep.subr.mxu0 0.0
        %1463 = vmatpush1.msra.mxu0 %v1427
        %1464 = vmatprep.subr.mxu0 0.0
        %1465 = vmatpush1.msra.mxu0 %v1426
        %1466 = vmatprep.subr.mxu0 0.0
        %1467 = vmatpush1.msra.mxu0 %v1425
        %1468 = vmatprep.subr.mxu0 0.0
        %1469 = vmatpush1.msra.mxu0 %v1424
        %1470 = vmatprep.subr.mxu0 0.0
        %1471 = vmatpush2.msra.mxu0 0.0
        %1472 = vmatprep.subr.mxu0 0.0
        %1473 = vmatpush2.msra.mxu0 0.0
        %1474 = vmatprep.subr.mxu0 0.0
        %1475 = vmatpush2.msra.mxu0 0.0
        %1476 = vmatprep.subr.mxu0 0.0
        %1477 = vmatpush2.msra.mxu0 0.0
        %1478 = vmatprep.subr.mxu0 0.0
        %1479 = vmatpush2.msra.mxu0 0.0
        %1480 = vmatprep.subr.mxu0 0.0
        %1481 = vmatpush2.msra.mxu0 0.0
        %1482 = vmatprep.subr.mxu0 0.0
        %1483 = vmatpush2.msra.mxu0 0.0
        %1484 = vmatprep.subr.mxu0 0.0
        %1485 = vmatpush2.msra.mxu0 0.0
        %1486 = vmatprep.subr.mxu0 0.0
        %1487 = vmatpush2.msra.mxu0 0.0
        %1488 = vmatprep.subr.mxu0 0.0
        %1489 = vmatpush2.msra.mxu0 0.0
        %1490 = vmatprep.subr.mxu0 0.0
        %1491 = vmatpush2.msra.mxu0 0.0
        %1492 = vmatprep.subr.mxu0 0.0
        %1493 = vmatpush2.msra.mxu0 0.0
        %1494 = vmatprep.subr.mxu0 0.0
        %1495 = vmatpush2.msra.mxu0 0.0
        %1496 = vmatprep.subr.mxu0 0.0
        %1497 = vmatpush2.msra.mxu0 0.0
        %1498 = vmatprep.subr.mxu0 0.0
        %1499 = vmatpush2.msra.mxu0 0.0
        %1500 = vmatprep.subr.mxu0 0.0
        %1501 = vmatpush2.msra.mxu0 0.0
        %1502 = vmatprep.mubr.f32.mxu0 0.0
        %1503 = vmatmul.mubr.f32.gmra.mxu0 %v1436
        %v1504 = vpop.f32.mrf.mxu0
        %v1505 = vadd.f32 %v1433, %v1504
        %v1506 = vpop.f32.mrf.mxu0
        %1507 = vdwg.mxu0
        %v1508 = vmul.f32 %v1505, 0.5
        %v1509 = vmul.f32 %v1505, 0.70710677
        %v1510 = vand.u32 2147483647, %v1509
        %v1511 = vmul.f32 %v1510, 0.3275911
        %v1512 = vadd.f32 %v1511, 1.0
        %v1513 = vrcp.pop %v1512
        %v1514 = vmul.f32 1.0, %v1513
        %v1515 = vmul.f32 %v1514, 1.0614054
        %v1516 = vadd.f32 %v1515, -1.4531521
        %v1517 = vmul.f32 %v1516, %v1514
        %v1518 = vadd.f32 %v1517, 1.4214138
        %v1519 = vmul.f32 %v1518, %v1514
        %v1520 = vadd.f32 %v1519, -0.28449672
        %v1521 = vmul.f32 %v1520, %v1514
        %v1522 = vadd.f32 %v1521, 0.2548296
        %v1523 = vmul.f32 %v1522, %v1514
        %v1524 = vsub.f32 0.0, %v1510
        %v1525 = vmul.f32 %v1524, %v1510
        %v1526 = vmul.f32 %v1525, 1.442695
        %v1527 = vpow.pop %v1526
        %v1528 = vmul.f32 %v1523, %v1527
        %v1529 = vsub.f32 1.0, %v1528
        %vm1530 = vcmp.ge.f32.partialorder %v1509, 0.0
        %v1531 = vsub.f32 0.0, %v1529
        %v1532 = vsel %vm1530, %v1529, %v1531
        %v1533 = vadd.f32 %v1532, 1.0
        %v1534 = vmul.f32 %v1508, %v1533
        %v1535 = vld [vmem:[%s7] sm:$0xff]
        %v1536 = vld [vmem:[%s7 + $0x8] sm:$0xff]
        %v1537 = vld [vmem:[%s7 + $0x10] sm:$0xff]
        %v1538 = vld [vmem:[%s7 + $0x18] sm:$0xff]
        %v1539 = vld [vmem:[%s7 + $0x20] sm:$0xff]
        %v1540 = vld [vmem:[%s7 + $0x28] sm:$0xff]
        %v1541 = vld [vmem:[%s7 + $0x30] sm:$0xff]
        %v1542 = vld [vmem:[%s7 + $0x38] sm:$0xff]
        %v1543 = vld [vmem:[%s7 + $0x40] sm:$0xff]
        %v1544 = vld [vmem:[%s7 + $0x48] sm:$0xff]
        %v1545 = vld [vmem:[%s7 + $0x50] sm:$0xff]
        %v1546 = vld [vmem:[%s7 + $0x58] sm:$0xff]
        %v1547 = vld [vmem:[%s7 + $0x60] sm:$0xff]
        %v1548 = vld [vmem:[%s7 + $0x68] sm:$0xff]
        %v1549 = vld [vmem:[%s7 + $0x70] sm:$0xff]
        %v1550 = vld [vmem:[%s7 + $0x78] sm:$0xff]
        %v1551 = vlaneseq
        %v1552 = vshrl.u32 %v1551, 7
        %v1553 = vsub.s32 0, %v1552
        %v1554 = vrot.slane %v324, %v1553
        %1555 = vmatprep.subr.mxu0 0.0
        %1556 = vmatpush1.msra.mxu0 %v1550
        %1557 = vmatprep.subr.mxu0 0.0
        %1558 = vmatpush1.msra.mxu0 %v1549
        %1559 = vmatprep.subr.mxu0 0.0
        %1560 = vmatpush1.msra.mxu0 %v1548
        %1561 = vmatprep.subr.mxu0 0.0
        %1562 = vmatpush1.msra.mxu0 %v1547
        %1563 = vmatprep.subr.mxu0 0.0
        %1564 = vmatpush1.msra.mxu0 %v1546
        %1565 = vmatprep.subr.mxu0 0.0
        %1566 = vmatpush1.msra.mxu0 %v1545
        %1567 = vmatprep.subr.mxu0 0.0
        %1568 = vmatpush1.msra.mxu0 %v1544
        %1569 = vmatprep.subr.mxu0 0.0
        %1570 = vmatpush1.msra.mxu0 %v1543
        %1571 = vmatprep.subr.mxu0 0.0
        %1572 = vmatpush1.msra.mxu0 %v1542
        %1573 = vmatprep.subr.mxu0 0.0
        %1574 = vmatpush1.msra.mxu0 %v1541
        %1575 = vmatprep.subr.mxu0 0.0
        %1576 = vmatpush1.msra.mxu0 %v1540
        %1577 = vmatprep.subr.mxu0 0.0
        %1578 = vmatpush1.msra.mxu0 %v1539
        %1579 = vmatprep.subr.mxu0 0.0
        %1580 = vmatpush1.msra.mxu0 %v1538
        %1581 = vmatprep.subr.mxu0 0.0
        %1582 = vmatpush1.msra.mxu0 %v1537
        %1583 = vmatprep.subr.mxu0 0.0
        %1584 = vmatpush1.msra.mxu0 %v1536
        %1585 = vmatprep.subr.mxu0 0.0
        %1586 = vmatpush1.msra.mxu0 %v1535
        %1587 = vmatprep.subr.mxu0 0.0
        %1588 = vmatpush2.msra.mxu0 0.0
        %1589 = vmatprep.subr.mxu0 0.0
        %1590 = vmatpush2.msra.mxu0 0.0
        %1591 = vmatprep.subr.mxu0 0.0
        %1592 = vmatpush2.msra.mxu0 0.0
        %1593 = vmatprep.subr.mxu0 0.0
        %1594 = vmatpush2.msra.mxu0 0.0
        %1595 = vmatprep.subr.mxu0 0.0
        %1596 = vmatpush2.msra.mxu0 0.0
        %1597 = vmatprep.subr.mxu0 0.0
        %1598 = vmatpush2.msra.mxu0 0.0
        %1599 = vmatprep.subr.mxu0 0.0
        %1600 = vmatpush2.msra.mxu0 0.0
        %1601 = vmatprep.subr.mxu0 0.0
        %1602 = vmatpush2.msra.mxu0 0.0
        %1603 = vmatprep.subr.mxu0 0.0
        %1604 = vmatpush2.msra.mxu0 0.0
        %1605 = vmatprep.subr.mxu0 0.0
        %1606 = vmatpush2.msra.mxu0 0.0
        %1607 = vmatprep.subr.mxu0 0.0
        %1608 = vmatpush2.msra.mxu0 0.0
        %1609 = vmatprep.subr.mxu0 0.0
        %1610 = vmatpush2.msra.mxu0 0.0
        %1611 = vmatprep.subr.mxu0 0.0
        %1612 = vmatpush2.msra.mxu0 0.0
        %1613 = vmatprep.subr.mxu0 0.0
        %1614 = vmatpush2.msra.mxu0 0.0
        %1615 = vmatprep.subr.mxu0 0.0
        %1616 = vmatpush2.msra.mxu0 0.0
        %1617 = vmatprep.subr.mxu0 0.0
        %1618 = vmatpush2.msra.mxu0 0.0
        %1619 = vmatprep.mubr.f32.mxu0 0.0
        %1620 = vmatmul.mubr.f32.gmra.mxu0 %v1534
        %v1621 = vpop.f32.mrf.mxu0
        %v1622 = vadd.f32 %v1554, %v1621
        %v1623 = vpop.f32.mrf.mxu0
        %1624 = vdwg.mxu0
        %v1625 = vadd.f32 %v1400, %v1622
        %1626 = vst.msk [vmem:[%s307] sm:$0xff] %vm325, %v1625
        %s1627 = sand.u32 %s208, 1
        %s1628 = scalar_lea.sflag [#allocation3], %s1627
        %s1629 = sand.u32 %s208, 1
        %s1630 = smul.addr %s1629, 8
        %s1631 = scalar_lea.vmem [#allocation2], %s1630
        // Predicated region
        $region53: #{tpu_custom_call.1} parent=51 // pred_check
          %p1632 = pneg %p218
        $region54: #{tpu_custom_call.1} parent=51 // pred_check_branch
          %1634 = sbr.rel (%p1632) target = $region56
        $region55: #{tpu_custom_call.1} parent=51 // pred_region
          %s1636 = ssub.s32 128, 128
          %1637 = vsyncadd %s1628, %s1636
          %s1638 = smul.addr %s22, 128
          %s1639 = scalar_lea.hbm %s8, %s1638
          %s1641 = sshll.u32 %s1631, 4
          %s1642 = int_to_ptr.vmem [resolvable:$true] %s1641
          %1644 = dma.vmem_to_hbm [thread:$0]  %s1642, 128, %s1639, %s1628
        $region56: #{tpu_custom_call.1} parent=51 // pred_fallthru
          _
      $region52: #{tpu_custom_call.1} parent=5 // pred_fallthru
        _
      %p1645 = scmp.le.s32.totalorder 2, %s17
      // Predicated region
      $region57: #{tpu_custom_call.1} parent=5 // pred_check
        %p1646 = pneg %p1645
      $region58: #{tpu_custom_call.1} parent=5 // pred_check_branch
        %1648 = sbr.rel (%p1646) target = $region60
      $region59: #{tpu_custom_call.1} parent=5 // pred_region
        %s1649 = ssub.s32 %s17, 2
        // Predicated region
        $region61: #{tpu_custom_call.1} parent=59 // pred_check
          %p1650 = pneg %p224
        $region62: #{tpu_custom_call.1} parent=59 // pred_check_branch
          %1652 = sbr.rel (%p1650) target = $region64
        $region63: #{tpu_custom_call.1} parent=59 // pred_region
          %s1653 = sand.u32 %s209, 1
          %s1654 = scalar_lea.sflag [#allocation3], %s1653
          %s1655 = sand.u32 %s209, 1
          %s1656 = smul.addr %s1655, 8
          %s1657 = scalar_lea.vmem [#allocation2], %s1656
          %1658 = dma.done %s1654, 128
        $region64: #{tpu_custom_call.1} parent=59 // pred_fallthru
          _
      $region60: #{tpu_custom_call.1} parent=5 // pred_fallthru
        _
    $region6: #{tpu_custom_call.1} parent=1 // loop_footer
      %s21 = sadd.s32 1, %s17
    $region7: #{tpu_custom_call.1} parent=1 // loop_footer_branch
      %16 = sbr.rel target = $region3
    $region8: #{tpu_custom_call.1} parent=1 // loop_exit
      _
    %1659 = vsyncpa [#allocation3], 1
    %s1660 = scalar_lea.sflag [#allocation3], 1
    %1661 = vsyncpa %s1660, 1

</llo_original>
